<compile_context>
chip_gen: v7x
topology: tpu7x:2x2x1
jax: 0.10.0
libtpu: 0.0.40
codegen_flags: <defaults>
</compile_context>

<pallas_src>
import functools

import jax
import jax.numpy as jnp
from jax.experimental import pallas as pl
from jax.experimental.pallas import tpu as pltpu


def _conv_bn_relu_kernel(x_ref, w_ref, shift_ref, o_ref, *, k, stride, wide_k):
    """One (image, Cout-tile, H-tile) block: conv + folded-BN shift + ReLU.

    x_ref:     (1, Hp, Wp, Cin)     bf16, spatially padded NHWC image (whole)
    w_ref:     (k*k*Cin, tc)        bf16, BN-scale-folded weights (tap-major)
    shift_ref: (1, tc)              f32, folded BN shift (bias)
    o_ref:     (1, ht, Wo, tc)      f32 output block for this H-tile
    """
    _, ht, Wo, _ = o_ref.shape
    Cin = x_ref.shape[-1]
    M = ht * Wo
    h_idx = pl.program_id(2)
    h0 = h_idx * (ht * stride)          # first padded-input row for this tile

    def tap(kh, kw):
        if stride == 1:
            p = x_ref[0, pl.ds(h0 + kh, ht), pl.ds(kw, Wo), :]
        else:
            # Strided ref load (no value-space gather).
            p = x_ref[0, pl.ds(h0 + kh, ht, stride),
                      pl.ds(kw, Wo, stride), :]
        return p.reshape(M, Cin)

    if wide_k:
        # Lane-aligned (Cin % 128 == 0, or k == 1) im2col slab: pay the tap
        # shift once, then a single wide-K MXU matmul.
        taps = [tap(kh, kw) for kh in range(k) for kw in range(k)]
        slab = taps[0] if len(taps) == 1 else jnp.concatenate(taps, axis=-1)
        y = jnp.dot(slab, w_ref[...], preferred_element_type=jnp.float32)
    else:
        # Small / unaligned Cin: per-tap matmuls; M-tile chosen so this f32
        # accumulator stays within the vreg file (no VMEM spill re-reads).
        y = None
        for kh in range(k):
            for kw in range(k):
                t = kh * k + kw
                part = jnp.dot(tap(kh, kw),
                               w_ref[pl.ds(t * Cin, Cin), :],
                               preferred_element_type=jnp.float32)
                y = part if y is None else y + part

    y = jnp.maximum(y + shift_ref[...], 0.0)            # f32 epilogue
    o_ref[0] = y.reshape(ht, Wo, -1).astype(o_ref.dtype)


def _chip_params():
    """Generation-aware Cout-tile width and VMEM budget."""
    kind = ""
    try:
        kind = jax.devices()[0].device_kind.lower()
    except Exception:
        pass
    is_v5 = "v5" in kind
    is_v7 = ("v7" in kind) or (kind == "")          # unknown -> conservative
    tc_pref = 128 if is_v5 else 256                 # v5e: 4x128^2 MXU, 1 vst
    vmem_limit = (56 if is_v7 else 100) * 1024 * 1024
    return tc_pref, vmem_limit


def _vmem_bytes(Hp, Wp, Cin, k, tc, Wo, ht, wide_k):
    """Rough per-step working-set estimate (double-buffered pipeline blocks)."""
    x_blk = Hp * Wp * Cin * 2               # bf16 padded image
    w_blk = k * k * Cin * tc * 2            # bf16 weight tile
    o_blk = ht * Wo * tc * 4                # f32 output tile
    if wide_k:
        work = ht * Wo * k * k * Cin * 2 + ht * Wo * tc * 4   # slab + result
    else:
        work = 2 * ht * Wo * tc * 4                           # acc + partial
    return 2 * (x_blk + w_blk + o_blk) + work


def _pick_h_tile(Ho, Wo, target_rows, fits):
    """Largest divisor of Ho with ht*Wo <= target_rows that fits VMEM."""
    cap = max(1, min(Ho, max(1, target_rows // max(Wo, 1))))
    for ht in range(cap, 0, -1):
        if Ho % ht == 0 and fits(ht):
            return ht
    # TODO(synk): for gigantic images the whole padded-image input block may
    # itself exceed VMEM -> needs manual-DMA H-halo tiling of the input too.
    return 1


@functools.partial(jax.jit, static_argnames=("stride", "groups", "eps"))
def conv_bn_act(x_nchw, weight, gamma, beta, running_mean, running_var,
                *, stride=1, groups=1, eps=1e-5):
    """ConvBnAct forward. x_nchw: (N, Cin, H, W). weight: (Cout, Cin//groups, k, k)."""
    N, Cin, H, W = x_nchw.shape
    Cout, Cin_g, k, _ = weight.shape
    Cout_g = Cout // groups
    pad = (k - 1) // 2
    Hp, Wp = H + 2 * pad, W + 2 * pad
    Ho = (H + 2 * pad - k) // stride + 1
    Wo = (W + 2 * pad - k) // stride + 1
    f32 = jnp.float32

    # Inference BatchNorm folded into per-channel scale & shift.
    scale = gamma.astype(f32) / jnp.sqrt(running_var.astype(f32) + eps)
    shift = beta.astype(f32) - running_mean.astype(f32) * scale

    # Cast to bf16 BEFORE the layout pass (halves transpose/pad HBM traffic),
    # NCHW -> NHWC (channels on lanes), spatial "same" padding.
    x = jnp.transpose(x_nchw.astype(jnp.bfloat16), (0, 2, 3, 1))
    x_pad = jnp.pad(x, ((0, 0), (pad, pad), (pad, pad), (0, 0)))

    # Fold BN scale into the conv weight; lay out as (k*k*Cin, Cout) with the
    # group structure embedded block-diagonally (single launch for all groups).
    w_scaled = weight.astype(f32) * scale[:, None, None, None]  # (Cout,Cin_g,k,k)
    w_r = jnp.transpose(w_scaled, (2, 3, 1, 0))                 # (k,k,Cin_g,Cout)
    if groups == 1:
        w_full = w_r
    else:
        # TODO(synk): replace block-diagonal weight with a group grid axis for
        # large `groups` (depthwise) to avoid groups-x wasted MXU FLOPs.
        w_full = jnp.zeros((k, k, Cin, Cout), f32)
        for g in range(groups):
            w_full = w_full.at[:, :, g * Cin_g:(g + 1) * Cin_g,
                               g * Cout_g:(g + 1) * Cout_g].set(
                w_r[..., g * Cout_g:(g + 1) * Cout_g])

    # Pad Cout so output stores are lane-dense (multiple of 128).
    LANE = 128
    Cout_pad = -(-Cout // LANE) * LANE
    w_mat = jnp.pad(w_full.reshape(k * k * Cin, Cout),
                    ((0, 0), (0, Cout_pad - Cout))).astype(jnp.bfloat16)
    shift_p = jnp.pad(shift, (0, Cout_pad - Cout)).reshape(1, Cout_pad)

    tc_pref, vmem_limit = _chip_params()
    tc = tc_pref if Cout_pad % tc_pref == 0 else 128

    # Wide-K (single matmul over k*k*Cin) only when the tap concat is
    # lane-aligned; otherwise per-tap accumulation with a vreg-sized M tile.
    wide_k = (k == 1) or (Cin % 128 == 0)
    target_rows = 512 if wide_k else (128 if tc == 128 else 64)
    fits = lambda ht: _vmem_bytes(Hp, Wp, Cin, k, tc, Wo, ht, wide_k) <= int(0.8 * vmem_limit)
    ht = _pick_h_tile(Ho, Wo, target_rows, fits)

    kern = functools.partial(_conv_bn_relu_kernel,
                             k=k, stride=stride, wide_k=wide_k)
    out = pl.pallas_call(
        kern,
        out_shape=jax.ShapeDtypeStruct((N, Ho, Wo, Cout_pad), f32),
        grid_spec=pltpu.PrefetchScalarGridSpec(
            num_scalar_prefetch=0,
            # H innermost: activation + weight blocks resident, output streams.
            grid=(N, Cout_pad // tc, Ho // ht),
            in_specs=[
                pl.BlockSpec((1, Hp, Wp, Cin), lambda n, j, h: (n, 0, 0, 0)),
                pl.BlockSpec((k * k * Cin, tc), lambda n, j, h: (0, j)),
                pl.BlockSpec((1, tc), lambda n, j, h: (0, j)),
            ],
            out_specs=pl.BlockSpec((1, ht, Wo, tc), lambda n, j, h: (n, h, 0, j)),
        ),
        compiler_params=pltpu.CompilerParams(
            dimension_semantics=("parallel", "parallel", "parallel"),
            vmem_limit_bytes=vmem_limit),
    )(x_pad, w_mat, shift_p)

    out = out[..., :Cout]
    # TODO(synk): keep NHWC + padded Cout between layers to delete this slice
    # and transpose (pure layout overhead around the kernel).
    return jnp.transpose(out, (0, 3, 1, 2))        # back to NCHW, f32


def _reference(x, w, gamma, beta, mean, var, *, stride, groups, eps=1e-5):
    y = jax.lax.conv_general_dilated(
        x.astype(jnp.float32), w.astype(jnp.float32),
        window_strides=(stride, stride),
        padding=[((w.shape[2] - 1) // 2,) * 2, ((w.shape[3] - 1) // 2,) * 2],
        dimension_numbers=("NCHW", "OIHW", "NCHW"),
        feature_group_count=groups)
    s = (gamma / jnp.sqrt(var + eps)).reshape(1, -1, 1, 1)
    b = (beta - mean * gamma / jnp.sqrt(var + eps)).reshape(1, -1, 1, 1)
    return jnp.maximum(y * s + b, 0.0)


if __name__ == "__main__":
    # ConvBnAct(in_channels=4, out_channels=8, kernel_size=3, stride=1, activation=ReLU)
    N, Cin, H, W = 2, 4, 16, 16
    Cout, k, stride, groups = 8, 3, 1, 1

    key = jax.random.PRNGKey(0)
    kx, kw_, kg, kb, km, kv = jax.random.split(key, 6)

    x = jax.random.normal(kx, (N, Cin, H, W), dtype=jnp.float32)
    weight = jax.random.normal(kw_, (Cout, Cin // groups, k, k), dtype=jnp.float32) * 0.1
    gamma = jax.random.normal(kg, (Cout,), dtype=jnp.float32) * 0.1 + 1.0
    beta = jax.random.normal(kb, (Cout,), dtype=jnp.float32) * 0.1
    running_mean = jax.random.normal(km, (Cout,), dtype=jnp.float32) * 0.1
    running_var = jax.random.uniform(kv, (Cout,), dtype=jnp.float32,
                                     minval=0.5, maxval=1.5)

    out = conv_bn_act(x, weight, gamma, beta, running_mean, running_var,
                      stride=stride, groups=groups)
    out = jax.block_until_ready(out)

    ref = _reference(x, weight, gamma, beta, running_mean, running_var,
                     stride=stride, groups=groups)
    assert out.shape == (N, Cout, H, W)
    max_err = float(jnp.max(jnp.abs(out - ref)))
    # bf16 operands / f32 accumulation -> small rounding difference vs f32 conv.
    assert jnp.allclose(out, ref, atol=2e-2, rtol=2e-2), \
        f"mismatch vs reference (max abs err={max_err})"

    print("KERNEL_OK")
</pallas_src>

<mosaic_0001>
module attributes {stable_mosaic.version = 11 : i64} {
  func.func @_conv_bn_relu_kernel(%arg0: i32, %arg1: i32, %arg2: i32, %arg3: memref<1x18x18x4xbf16, #tpu.memory_space<vmem>>, %arg4: memref<36x128xbf16, #tpu.memory_space<vmem>>, %arg5: memref<1x128xf32, #tpu.memory_space<vmem>>, %arg6: memref<1x8x16x128xf32, #tpu.memory_space<vmem>>) attributes {dimension_semantics = [#tpu.dimension_semantics<parallel>, #tpu.dimension_semantics<parallel>, #tpu.dimension_semantics<parallel>], iteration_bounds = array<i64: 2, 1, 2>, scalar_prefetch = 0 : i64, scratch_operands = 0 : i64, tpu.core_type = #tpu.core_type<tc>, window_params = [{transform_indices = @transform_0, window_bounds = array<i64: 1, 18, 18, 4>}, {transform_indices = @transform_1, window_bounds = array<i64: 36, 128>}, {transform_indices = @transform_2, window_bounds = array<i64: 1, 128>}, {transform_indices = @transform_3, window_bounds = array<i64: 1, 8, 16, 128>}]} {
    %c8_i32 = arith.constant 8 : i32
    %0 = arith.muli %arg2, %c8_i32 : i32
    %c0_i32 = arith.constant 0 : i32
    %1 = arith.addi %0, %c0_i32 : i32
    %c0 = arith.constant 0 : index
    %2 = arith.index_cast %1 : i32 to index
    %c0_0 = arith.constant 0 : index
    %c0_1 = arith.constant 0 : index
    %3 = vector.load %arg3[%c0, %2, %c0_0, %c0_1] : memref<1x18x18x4xbf16, #tpu.memory_space<vmem>>, vector<1x8x16x4xbf16>
    %4 = vector.shape_cast %3 : vector<1x8x16x4xbf16> to vector<8x16x4xbf16>
    %5 = vector.shape_cast %4 : vector<8x16x4xbf16> to vector<128x4xbf16>
    %c0_2 = arith.constant 0 : index
    %c0_3 = arith.constant 0 : index
    %6 = vector.load %arg4[%c0_2, %c0_3] : memref<36x128xbf16, #tpu.memory_space<vmem>>, vector<4x128xbf16>
    %cst = arith.constant dense<0.000000e+00> : vector<128x128xf32>
    %7 = tpu.matmul %5, %6, %cst {dimension_numbers = #tpu.dot_dimension_numbers<[1], [0], [0], [1], [0, 0, 1, 1], [], []>} : vector<128x4xbf16>, vector<4x128xbf16>, vector<128x128xf32> -> vector<128x128xf32>
    %c0_i32_4 = arith.constant 0 : i32
    %8 = arith.addi %0, %c0_i32_4 : i32
    %c0_5 = arith.constant 0 : index
    %9 = arith.index_cast %8 : i32 to index
    %c1 = arith.constant 1 : index
    %c0_6 = arith.constant 0 : index
    %10 = vector.load %arg3[%c0_5, %9, %c1, %c0_6] : memref<1x18x18x4xbf16, #tpu.memory_space<vmem>>, vector<1x8x16x4xbf16>
    %11 = vector.shape_cast %10 : vector<1x8x16x4xbf16> to vector<8x16x4xbf16>
    %12 = vector.shape_cast %11 : vector<8x16x4xbf16> to vector<128x4xbf16>
    %c4 = arith.constant 4 : index
    %c0_7 = arith.constant 0 : index
    %13 = vector.load %arg4[%c4, %c0_7] : memref<36x128xbf16, #tpu.memory_space<vmem>>, vector<4x128xbf16>
    %cst_8 = arith.constant dense<0.000000e+00> : vector<128x128xf32>
    %14 = tpu.matmul %12, %13, %cst_8 {dimension_numbers = #tpu.dot_dimension_numbers<[1], [0], [0], [1], [0, 0, 1, 1], [], []>} : vector<128x4xbf16>, vector<4x128xbf16>, vector<128x128xf32> -> vector<128x128xf32>
    %15 = arith.addf %7, %14 : vector<128x128xf32>
    %c0_i32_9 = arith.constant 0 : i32
    %16 = arith.addi %0, %c0_i32_9 : i32
    %c0_10 = arith.constant 0 : index
    %17 = arith.index_cast %16 : i32 to index
    %c2 = arith.constant 2 : index
    %c0_11 = arith.constant 0 : index
    %18 = vector.load %arg3[%c0_10, %17, %c2, %c0_11] : memref<1x18x18x4xbf16, #tpu.memory_space<vmem>>, vector<1x8x16x4xbf16>
    %19 = vector.shape_cast %18 : vector<1x8x16x4xbf16> to vector<8x16x4xbf16>
    %20 = vector.shape_cast %19 : vector<8x16x4xbf16> to vector<128x4xbf16>
    %c8 = arith.constant 8 : index
    %c0_12 = arith.constant 0 : index
    %21 = vector.load %arg4[%c8, %c0_12] : memref<36x128xbf16, #tpu.memory_space<vmem>>, vector<4x128xbf16>
    %cst_13 = arith.constant dense<0.000000e+00> : vector<128x128xf32>
    %22 = tpu.matmul %20, %21, %cst_13 {dimension_numbers = #tpu.dot_dimension_numbers<[1], [0], [0], [1], [0, 0, 1, 1], [], []>} : vector<128x4xbf16>, vector<4x128xbf16>, vector<128x128xf32> -> vector<128x128xf32>
    %23 = arith.addf %15, %22 : vector<128x128xf32>
    %c1_i32 = arith.constant 1 : i32
    %24 = arith.addi %0, %c1_i32 : i32
    %c0_14 = arith.constant 0 : index
    %25 = arith.index_cast %24 : i32 to index
    %c0_15 = arith.constant 0 : index
    %c0_16 = arith.constant 0 : index
    %26 = vector.load %arg3[%c0_14, %25, %c0_15, %c0_16] : memref<1x18x18x4xbf16, #tpu.memory_space<vmem>>, vector<1x8x16x4xbf16>
    %27 = vector.shape_cast %26 : vector<1x8x16x4xbf16> to vector<8x16x4xbf16>
    %28 = vector.shape_cast %27 : vector<8x16x4xbf16> to vector<128x4xbf16>
    %c12 = arith.constant 12 : index
    %c0_17 = arith.constant 0 : index
    %29 = vector.load %arg4[%c12, %c0_17] : memref<36x128xbf16, #tpu.memory_space<vmem>>, vector<4x128xbf16>
    %cst_18 = arith.constant dense<0.000000e+00> : vector<128x128xf32>
    %30 = tpu.matmul %28, %29, %cst_18 {dimension_numbers = #tpu.dot_dimension_numbers<[1], [0], [0], [1], [0, 0, 1, 1], [], []>} : vector<128x4xbf16>, vector<4x128xbf16>, vector<128x128xf32> -> vector<128x128xf32>
    %31 = arith.addf %23, %30 : vector<128x128xf32>
    %c1_i32_19 = arith.constant 1 : i32
    %32 = arith.addi %0, %c1_i32_19 : i32
    %c0_20 = arith.constant 0 : index
    %33 = arith.index_cast %32 : i32 to index
    %c1_21 = arith.constant 1 : index
    %c0_22 = arith.constant 0 : index
    %34 = vector.load %arg3[%c0_20, %33, %c1_21, %c0_22] : memref<1x18x18x4xbf16, #tpu.memory_space<vmem>>, vector<1x8x16x4xbf16>
    %35 = vector.shape_cast %34 : vector<1x8x16x4xbf16> to vector<8x16x4xbf16>
    %36 = vector.shape_cast %35 : vector<8x16x4xbf16> to vector<128x4xbf16>
    %c16 = arith.constant 16 : index
    %c0_23 = arith.constant 0 : index
    %37 = vector.load %arg4[%c16, %c0_23] : memref<36x128xbf16, #tpu.memory_space<vmem>>, vector<4x128xbf16>
    %cst_24 = arith.constant dense<0.000000e+00> : vector<128x128xf32>
    %38 = tpu.matmul %36, %37, %cst_24 {dimension_numbers = #tpu.dot_dimension_numbers<[1], [0], [0], [1], [0, 0, 1, 1], [], []>} : vector<128x4xbf16>, vector<4x128xbf16>, vector<128x128xf32> -> vector<128x128xf32>
    %39 = arith.addf %31, %38 : vector<128x128xf32>
    %c1_i32_25 = arith.constant 1 : i32
    %40 = arith.addi %0, %c1_i32_25 : i32
    %c0_26 = arith.constant 0 : index
    %41 = arith.index_cast %40 : i32 to index
    %c2_27 = arith.constant 2 : index
    %c0_28 = arith.constant 0 : index
    %42 = vector.load %arg3[%c0_26, %41, %c2_27, %c0_28] : memref<1x18x18x4xbf16, #tpu.memory_space<vmem>>, vector<1x8x16x4xbf16>
    %43 = vector.shape_cast %42 : vector<1x8x16x4xbf16> to vector<8x16x4xbf16>
    %44 = vector.shape_cast %43 : vector<8x16x4xbf16> to vector<128x4xbf16>
    %c20 = arith.constant 20 : index
    %c0_29 = arith.constant 0 : index
    %45 = vector.load %arg4[%c20, %c0_29] : memref<36x128xbf16, #tpu.memory_space<vmem>>, vector<4x128xbf16>
    %cst_30 = arith.constant dense<0.000000e+00> : vector<128x128xf32>
    %46 = tpu.matmul %44, %45, %cst_30 {dimension_numbers = #tpu.dot_dimension_numbers<[1], [0], [0], [1], [0, 0, 1, 1], [], []>} : vector<128x4xbf16>, vector<4x128xbf16>, vector<128x128xf32> -> vector<128x128xf32>
    %47 = arith.addf %39, %46 : vector<128x128xf32>
    %c2_i32 = arith.constant 2 : i32
    %48 = arith.addi %0, %c2_i32 : i32
    %c0_31 = arith.constant 0 : index
    %49 = arith.index_cast %48 : i32 to index
    %c0_32 = arith.constant 0 : index
    %c0_33 = arith.constant 0 : index
    %50 = vector.load %arg3[%c0_31, %49, %c0_32, %c0_33] : memref<1x18x18x4xbf16, #tpu.memory_space<vmem>>, vector<1x8x16x4xbf16>
    %51 = vector.shape_cast %50 : vector<1x8x16x4xbf16> to vector<8x16x4xbf16>
    %52 = vector.shape_cast %51 : vector<8x16x4xbf16> to vector<128x4xbf16>
    %c24 = arith.constant 24 : index
    %c0_34 = arith.constant 0 : index
    %53 = vector.load %arg4[%c24, %c0_34] : memref<36x128xbf16, #tpu.memory_space<vmem>>, vector<4x128xbf16>
    %cst_35 = arith.constant dense<0.000000e+00> : vector<128x128xf32>
    %54 = tpu.matmul %52, %53, %cst_35 {dimension_numbers = #tpu.dot_dimension_numbers<[1], [0], [0], [1], [0, 0, 1, 1], [], []>} : vector<128x4xbf16>, vector<4x128xbf16>, vector<128x128xf32> -> vector<128x128xf32>
    %55 = arith.addf %47, %54 : vector<128x128xf32>
    %c2_i32_36 = arith.constant 2 : i32
    %56 = arith.addi %0, %c2_i32_36 : i32
    %c0_37 = arith.constant 0 : index
    %57 = arith.index_cast %56 : i32 to index
    %c1_38 = arith.constant 1 : index
    %c0_39 = arith.constant 0 : index
    %58 = vector.load %arg3[%c0_37, %57, %c1_38, %c0_39] : memref<1x18x18x4xbf16, #tpu.memory_space<vmem>>, vector<1x8x16x4xbf16>
    %59 = vector.shape_cast %58 : vector<1x8x16x4xbf16> to vector<8x16x4xbf16>
    %60 = vector.shape_cast %59 : vector<8x16x4xbf16> to vector<128x4xbf16>
    %c28 = arith.constant 28 : index
    %c0_40 = arith.constant 0 : index
    %61 = vector.load %arg4[%c28, %c0_40] : memref<36x128xbf16, #tpu.memory_space<vmem>>, vector<4x128xbf16>
    %cst_41 = arith.constant dense<0.000000e+00> : vector<128x128xf32>
    %62 = tpu.matmul %60, %61, %cst_41 {dimension_numbers = #tpu.dot_dimension_numbers<[1], [0], [0], [1], [0, 0, 1, 1], [], []>} : vector<128x4xbf16>, vector<4x128xbf16>, vector<128x128xf32> -> vector<128x128xf32>
    %63 = arith.addf %55, %62 : vector<128x128xf32>
    %c2_i32_42 = arith.constant 2 : i32
    %64 = arith.addi %0, %c2_i32_42 : i32
    %c0_43 = arith.constant 0 : index
    %65 = arith.index_cast %64 : i32 to index
    %c2_44 = arith.constant 2 : index
    %c0_45 = arith.constant 0 : index
    %66 = vector.load %arg3[%c0_43, %65, %c2_44, %c0_45] : memref<1x18x18x4xbf16, #tpu.memory_space<vmem>>, vector<1x8x16x4xbf16>
    %67 = vector.shape_cast %66 : vector<1x8x16x4xbf16> to vector<8x16x4xbf16>
    %68 = vector.shape_cast %67 : vector<8x16x4xbf16> to vector<128x4xbf16>
    %c32 = arith.constant 32 : index
    %c0_46 = arith.constant 0 : index
    %69 = vector.load %arg4[%c32, %c0_46] : memref<36x128xbf16, #tpu.memory_space<vmem>>, vector<4x128xbf16>
    %cst_47 = arith.constant dense<0.000000e+00> : vector<128x128xf32>
    %70 = tpu.matmul %68, %69, %cst_47 {dimension_numbers = #tpu.dot_dimension_numbers<[1], [0], [0], [1], [0, 0, 1, 1], [], []>} : vector<128x4xbf16>, vector<4x128xbf16>, vector<128x128xf32> -> vector<128x128xf32>
    %71 = arith.addf %63, %70 : vector<128x128xf32>
    %c0_48 = arith.constant 0 : index
    %c0_49 = arith.constant 0 : index
    %72 = vector.load %arg5[%c0_48, %c0_49] : memref<1x128xf32, #tpu.memory_space<vmem>>, vector<1x128xf32>
    %73 = vector.broadcast %72 : vector<1x128xf32> to vector<128x128xf32>
    %74 = arith.addf %71, %73 : vector<128x128xf32>
    %cst_50 = arith.constant 0.000000e+00 : f32
    %75 = vector.broadcast %cst_50 : f32 to vector<128x128xf32>
    %76 = arith.maximumf %74, %75 : vector<128x128xf32>
    %77 = vector.shape_cast %76 : vector<128x128xf32> to vector<8x16x128xf32>
    %c0_51 = arith.constant 0 : index
    %c0_52 = arith.constant 0 : index
    %c0_53 = arith.constant 0 : index
    %c0_54 = arith.constant 0 : index
    %78 = vector.load %arg6[%c0_51, %c0_52, %c0_53, %c0_54] : memref<1x8x16x128xf32, #tpu.memory_space<vmem>>, vector<1x8x16x128xf32>
    %79 = vector.shape_cast %78 : vector<1x8x16x128xf32> to vector<8x16x128xf32>
    %80 = vector.shape_cast %77 : vector<8x16x128xf32> to vector<1x8x16x128xf32>
    tpu.vector_store %arg6[%c0_51, %c0_52, %c0_53, %c0_54], %80 {strides = array<i32>} : memref<1x8x16x128xf32, #tpu.memory_space<vmem>>, vector<1x8x16x128xf32>,
    return
  }
  func.func @transform_0(%arg0: i32, %arg1: i32, %arg2: i32) -> (i32, i32, i32, i32) {
    %c0_i32 = arith.constant 0 : i32
    %c0_i32_0 = arith.constant 0 : i32
    %c0_i32_1 = arith.constant 0 : i32
    %c0_i32_2 = arith.constant 0 : i32
    return %arg0, %c0_i32, %c0_i32_0, %c0_i32_1 : i32, i32, i32, i32
  }
  func.func @transform_1(%arg0: i32, %arg1: i32, %arg2: i32) -> (i32, i32) {
    %c0_i32 = arith.constant 0 : i32
    %c0_i32_0 = arith.constant 0 : i32
    return %c0_i32, %arg1 : i32, i32
  }
  func.func @transform_2(%arg0: i32, %arg1: i32, %arg2: i32) -> (i32, i32) {
    %c0_i32 = arith.constant 0 : i32
    %c0_i32_0 = arith.constant 0 : i32
    return %c0_i32, %arg1 : i32, i32
  }
  func.func @transform_3(%arg0: i32, %arg1: i32, %arg2: i32) -> (i32, i32, i32, i32) {
    %c0_i32 = arith.constant 0 : i32
    %c0_i32_0 = arith.constant 0 : i32
    return %arg0, %arg2, %c0_i32, %arg1 : i32, i32, i32, i32
  }
}

</mosaic_0001>

<llo_original>
// kernel: conv_bn_act.1
$region0: #{conv_bn_act.1}
  #allocation0 [shape = 'u32[]', space=smem, size = 0x4, offset = 0x4, fixed_abs, tag = 'smem constant byte address 0x4 - core index']
  #allocation1 [shape = 'u32[144,128]{1,0:T(1,128)}', space=vmem, size = 0x12000, scoped, tag = 'internal scratch']
  %s0 = inlined_call_operand.hbm [shape: bf16[2,18,18,4], index: 0, kind: input, shape index: {}]
  %s1 = inlined_call_operand.hbm [shape: bf16[36,128], index: 1, kind: input, shape index: {}]
  %s2 = inlined_call_operand.hbm [shape: f32[1,128], index: 2, kind: input, shape index: {}]
  %s3 = inlined_call_operand.hbm [shape: f32[2,16,16,128], index: 3, kind: output, shape index: {}]
  %s4 = sld [smem:[#allocation0]]
  $region57: #{conv_bn_act.1} parent=0
    _
  %s6 = ssub.s32 1, %s4
  %s7 = scalar_select 0, %s6, %s4
  $region1: #{conv_bn_act.1} parent=0
    #allocation2 [shape = 'u8[221184]{0}', space=vmem, size = 0x36000, scoped, tag = 'input window, operand 0']
    #allocation3 [shape = 's32[2]{0}', space=sflag, size = 0x8, scoped, tag = 'scoped memory for conv_bn_act.1']
    #allocation4 [shape = 's32[2]{0}', space=sflag, size = 0x8, scoped, tag = 'scoped memory for conv_bn_act.1']
    #allocation5 [shape = 'u8[10240]{0}', space=vmem, size = 0x2800, scoped, tag = 'input window, operand 1, single buffered']
    #allocation6 [shape = 's32[1]{0}', space=sflag, size = 0x4, scoped, tag = 'scoped memory for conv_bn_act.1']
    #allocation7 [shape = 'u8[512]{0}', space=vmem, size = 0x400, scoped, tag = 'input window, operand 2, single buffered']
    #allocation8 [shape = 'u8[131072]{0}', space=vmem, size = 0x20000, scoped, tag = 'output window, operand 0']
    %8 = vsyncpa [#allocation3], 0
    %s9 = scalar_lea.sflag [#allocation3], 1
    %10 = vsyncpa %s9, 0
    %11 = vsyncpa [#allocation6], 0
    %12 = vsyncpa [#allocation4], 0
    %s13 = scalar_lea.sflag [#allocation4], 1
    %14 = vsyncpa %s13, 0
    loop: start=0, step=1, limit=6
    $region2: #{conv_bn_act.1} parent=1 // loop_pre_header
      _
    $region3: #{conv_bn_act.1} parent=1 // loop_header
      %s16 = sphi 0, %s20
      %p17 = scmp.ge.s32.totalorder %s16, 6
      %s23 = sphi 0, %s42
      %s24 = sphi 0, %s38
      %s25 = sphi 0, %s34
      %s26 = sphi 0, %s23
      %s27 = sphi 0, %s24
      %s28 = sphi 0, %s25
      %s29 = sphi 0, %s26
      %s30 = sphi 0, %s27
      %s31 = sphi 0, %s28
      %s45 = sphi 0, %s47
      %s48 = sphi 0, %s45
      %s49 = sphi 0, %s48
      %s65 = sphi 0, %s49
      %s71 = sphi 0, %s73
      %s74 = sphi 0, %s71
      %s75 = sphi 0, %s74
      %s91 = sphi 0, %s75
      %s97 = sphi 0, %s99
      %s100 = sphi 0, %s97
      %s101 = sphi 0, %s100
      %s117 = sphi 0, %s101
      %s127 = sphi 0, %s129
      %s130 = sphi 0, %s127
      %s131 = sphi 0, %s130
      %s147 = sphi 0, %s131
    $region4: #{conv_bn_act.1} parent=1 // loop_header_branch
      %19 = sbr.rel (%p17) target = $region8
    $region5: #{conv_bn_act.1} parent=1 // loop_body
      %s21 = ssub.s32 %s16, 1
      %s22 = ssub.s32 %s16, 2
      %s32 = sadd.s32 1, %s25
      %p33 = scmp.ge.s32.totalorder %s32, 2
      %s34 = scalar_select %p33, 0, %s32
      %s35 = sadd.s32 1, %s24
      %s36 = scalar_select %p33, %s35, %s24
      %p37 = scmp.ge.s32.totalorder %s36, 1
      %s38 = scalar_select %p37, 0, %s36
      %s39 = sadd.s32 1, %s23
      %s40 = scalar_select %p37, %s39, %s23
      %p41 = scmp.ge.s32.totalorder %s40, 2
      %s42 = scalar_select %p41, 0, %s40
      %s43 = ssub.s32 %s23, %s42
      %p44 = scmp.eq.s32.totalorder %s43, 0
      %s46 = sadd.s32 %s45, 1
      %s47 = scalar_select %p44, %s45, %s46
      %p50 = pneg %p44
      %p51 = scmp.eq.s32.totalorder %s16, 3
      %p52 = por %p50, %p51
      %p53 = scmp.ne.s32.totalorder %s45, %s48
      %p54 = scmp.eq.s32.totalorder %s16, 0
      %p55 = por %p53, %p54
      %p56 = scmp.ne.s32.totalorder %s45, %s48
      %p57 = scmp.eq.s32.totalorder %s21, 3
      %p58 = por %p56, %p57
      %p59 = scmp.ne.s32.totalorder %s48, %s49
      %p60 = scmp.eq.s32.totalorder %s21, 0
      %p61 = por %p59, %p60
      %p62 = scmp.ne.s32.totalorder %s48, %s49
      %p63 = scmp.eq.s32.totalorder %s22, 3
      %p64 = por %p62, %p63
      %p66 = scmp.ne.s32.totalorder %s49, %s65
      %p67 = scmp.eq.s32.totalorder %s22, 0
      %p68 = por %p66, %p67
      %s69 = ssub.s32 %s24, %s38
      %p70 = scmp.eq.s32.totalorder %s69, 0
      %s72 = sadd.s32 %s71, 1
      %s73 = scalar_select %p70, %s71, %s72
      %p76 = pneg %p70
      %p77 = scmp.eq.s32.totalorder %s16, 3
      %p78 = por %p76, %p77
      %p79 = scmp.ne.s32.totalorder %s71, %s74
      %p80 = scmp.eq.s32.totalorder %s16, 0
      %p81 = por %p79, %p80
      %p82 = scmp.ne.s32.totalorder %s71, %s74
      %p83 = scmp.eq.s32.totalorder %s21, 3
      %p84 = por %p82, %p83
      %p85 = scmp.ne.s32.totalorder %s74, %s75
      %p86 = scmp.eq.s32.totalorder %s21, 0
      %p87 = por %p85, %p86
      %p88 = scmp.ne.s32.totalorder %s74, %s75
      %p89 = scmp.eq.s32.totalorder %s22, 3
      %p90 = por %p88, %p89
      %p92 = scmp.ne.s32.totalorder %s75, %s91
      %p93 = scmp.eq.s32.totalorder %s22, 0
      %p94 = por %p92, %p93
      %s95 = ssub.s32 %s24, %s38
      %p96 = scmp.eq.s32.totalorder %s95, 0
      %s98 = sadd.s32 %s97, 1
      %s99 = scalar_select %p96, %s97, %s98
      %p102 = pneg %p96
      %p103 = scmp.eq.s32.totalorder %s16, 3
      %p104 = por %p102, %p103
      %p105 = scmp.ne.s32.totalorder %s97, %s100
      %p106 = scmp.eq.s32.totalorder %s16, 0
      %p107 = por %p105, %p106
      %p108 = scmp.ne.s32.totalorder %s97, %s100
      %p109 = scmp.eq.s32.totalorder %s21, 3
      %p110 = por %p108, %p109
      %p111 = scmp.ne.s32.totalorder %s100, %s101
      %p112 = scmp.eq.s32.totalorder %s21, 0
      %p113 = por %p111, %p112
      %p114 = scmp.ne.s32.totalorder %s100, %s101
      %p115 = scmp.eq.s32.totalorder %s22, 3
      %p116 = por %p114, %p115
      %p118 = scmp.ne.s32.totalorder %s101, %s117
      %p119 = scmp.eq.s32.totalorder %s22, 0
      %p120 = por %p118, %p119
      %s121 = ssub.s32 %s23, %s42
      %s122 = ssub.s32 %s25, %s34
      %s123 = sor.u32 %s121, %s122
      %s124 = ssub.s32 %s24, %s38
      %s125 = sor.u32 %s123, %s124
      %p126 = scmp.eq.s32.totalorder %s125, 0
      %s128 = sadd.s32 %s127, 1
      %s129 = scalar_select %p126, %s127, %s128
      %p132 = pneg %p126
      %p133 = scmp.eq.s32.totalorder %s16, 3
      %p134 = por %p132, %p133
      %p135 = scmp.ne.s32.totalorder %s127, %s130
      %p136 = scmp.eq.s32.totalorder %s16, 0
      %p137 = por %p135, %p136
      %p138 = scmp.ne.s32.totalorder %s127, %s130
      %p139 = scmp.eq.s32.totalorder %s21, 3
      %p140 = por %p138, %p139
      %p141 = scmp.ne.s32.totalorder %s130, %s131
      %p142 = scmp.eq.s32.totalorder %s21, 0
      %p143 = por %p141, %p142
      %p144 = scmp.ne.s32.totalorder %s130, %s131
      %p145 = scmp.eq.s32.totalorder %s22, 3
      %p146 = por %p144, %p145
      %p148 = scmp.ne.s32.totalorder %s131, %s147
      %p149 = scmp.eq.s32.totalorder %s22, 0
      %p150 = por %p148, %p149
      %p151 = scmp.le.s32.totalorder 1, %s16
      %p152 = scmp.lt.s32.totalorder %s16, 5
      %p153 = pnand %p151, %p152
      %p154 = pneg %p153
      // Predicated region
      $region9: #{conv_bn_act.1} parent=5 // pred_check
        _
      $region10: #{conv_bn_act.1} parent=5 // pred_check_branch
        %156 = sbr.rel (%p153) target = $region12
      $region11: #{conv_bn_act.1} parent=5 // pred_region
        %s157 = ssub.s32 %s16, 1
        // Predicated region
        $region13: #{conv_bn_act.1} parent=11 // pred_check
          %p158 = pneg %p87
        $region14: #{conv_bn_act.1} parent=11 // pred_check_branch
          %160 = sbr.rel (%p158) target = $region16
        $region15: #{conv_bn_act.1} parent=11 // pred_region
          %s162 = ssub.s32 320, 320
          %163 = vsyncadd [#allocation6], %s162
          %s164 = smul.addr %s27, 64
          %s165 = scalar_lea.hbm %s1, %s164
          %s166 = sshll.u32 [#allocation5], 4
          %s167 = int_to_ptr.vmem [resolvable:$true] %s166
          %172 = dma.hbm_to_vmem [thread:$0]  %s165, 320, %s167, [#allocation6], 64, 64, 4
        $region16: #{conv_bn_act.1} parent=11 // pred_fallthru
          _
        // Predicated region
        $region17: #{conv_bn_act.1} parent=11 // pred_check
          %p173 = pneg %p113
        $region18: #{conv_bn_act.1} parent=11 // pred_check_branch
          %175 = sbr.rel (%p173) target = $region20
        $region19: #{conv_bn_act.1} parent=11 // pred_region
          %s177 = ssub.s32 16, 16
          %178 = vsyncadd [#allocation6], %s177
          %s179 = smul.addr %s27, 16
          %s180 = scalar_lea.hbm %s2, %s179
          %s182 = sshll.u32 [#allocation7], 4
          %s183 = int_to_ptr.vmem [resolvable:$true] %s182
          %185 = dma.hbm_to_vmem [thread:$0]  %s180, 16, %s183, [#allocation6]
        $region20: #{conv_bn_act.1} parent=11 // pred_fallthru
          _
      $region12: #{conv_bn_act.1} parent=5 // pred_fallthru
        _
      %p186 = scmp.lt.s32.totalorder %s16, 4
      // Predicated region
      $region21: #{conv_bn_act.1} parent=5 // pred_check
        %p187 = pneg %p186
      $region22: #{conv_bn_act.1} parent=5 // pred_check_branch
        %189 = sbr.rel (%p187) target = $region24
      $region23: #{conv_bn_act.1} parent=5 // pred_region
        // Predicated region
        $region25: #{conv_bn_act.1} parent=23 // pred_check
          %p190 = pneg %p55
        $region26: #{conv_bn_act.1} parent=23 // pred_check_branch
          %192 = sbr.rel (%p190) target = $region28
        $region27: #{conv_bn_act.1} parent=23 // pred_region
          %s193 = sand.u32 %s45, 1
          %s194 = scalar_lea.sflag [#allocation3], %s193
          %s195 = sand.u32 %s45, 1
          %s196 = smul.addr %s195, 216
          %s197 = scalar_lea.vmem [#allocation2], %s196
          %s199 = ssub.s32 3456, 3456
          %200 = vsyncadd %s194, %s199
          %s201 = smul.addr %s23, 54
          %s202 = smul.addr %s201, 64
          %s203 = scalar_lea.hbm %s0, %s202
          %s204 = sshll.u32 %s197, 4
          %s205 = int_to_ptr.vmem [resolvable:$true] %s204
          %210 = dma.hbm_to_vmem [thread:$0]  %s203, 3456, %s205, %s194, 64, 64, 4
        $region28: #{conv_bn_act.1} parent=23 // pred_fallthru
          _
      $region24: #{conv_bn_act.1} parent=5 // pred_fallthru
        _
      %p211 = scmp.le.s32.totalorder 1, %s16
      %p212 = scmp.lt.s32.totalorder %s16, 5
      %p213 = pnand %p211, %p212
      %p214 = pneg %p213
      // Predicated region
      $region29: #{conv_bn_act.1} parent=5 // pred_check
        _
      $region30: #{conv_bn_act.1} parent=5 // pred_check_branch
        %216 = sbr.rel (%p213) target = $region32
      $region31: #{conv_bn_act.1} parent=5 // pred_region
        %s217 = ssub.s32 %s16, 1
        %s218 = sand.u32 %s48, 1
        %s219 = scalar_lea.sflag [#allocation3], %s218
        %s220 = sand.u32 %s48, 1
        %s221 = smul.addr %s220, 216
        %s222 = scalar_lea.vmem [#allocation2], %s221
        // Predicated region
        $region33: #{conv_bn_act.1} parent=31 // pred_check
          %p223 = pneg %p61
        $region34: #{conv_bn_act.1} parent=31 // pred_check_branch
          %225 = sbr.rel (%p223) target = $region36
        $region35: #{conv_bn_act.1} parent=31 // pred_region
          %226 = dma.done %s219, 3456
        $region36: #{conv_bn_act.1} parent=31 // pred_fallthru
          _
        // Predicated region
        $region37: #{conv_bn_act.1} parent=31 // pred_check
          %p227 = pneg %p87
        $region38: #{conv_bn_act.1} parent=31 // pred_check_branch
          %229 = sbr.rel (%p227) target = $region40
        $region39: #{conv_bn_act.1} parent=31 // pred_region
          %230 = dma.done [#allocation6], 320
        $region40: #{conv_bn_act.1} parent=31 // pred_fallthru
          _
        // Predicated region
        $region41: #{conv_bn_act.1} parent=31 // pred_check
          %p231 = pneg %p113
        $region42: #{conv_bn_act.1} parent=31 // pred_check_branch
          %233 = sbr.rel (%p231) target = $region44
        $region43: #{conv_bn_act.1} parent=31 // pred_region
          %234 = dma.done [#allocation6], 16
        $region44: #{conv_bn_act.1} parent=31 // pred_fallthru
          _
        %s235 = sand.u32 %s48, 1
        %s236 = scalar_lea.sflag [#allocation3], %s235
        %s237 = sand.u32 %s48, 1
        %s238 = smul.addr %s237, 216
        %s239 = scalar_lea.vmem [#allocation2], %s238
        %p240 = pneg %p61
        %p241 = pneg %p58
        %p242 = pneg %p87
        %p243 = pneg %p84
        %p244 = pneg %p113
        %p245 = pneg %p110
        %p246 = pneg %p143
        %p247 = pneg %p140
        %s248 = sand.u32 %s130, 1
        %s249 = scalar_lea.sflag [#allocation4], %s248
        %s250 = sand.u32 %s130, 1
        %s251 = smul.addr %s250, 128
        %s252 = scalar_lea.vmem [#allocation8], %s251
        %s253 = smul.u32 8, %s28
        %s255 = smul.u32 %s28, 8
        %s256 = smul.u32 %s255, 3
        %s257 = smul.addr %s256, 4
        %s258 = scalar_lea.vmem %s222, %s257 [#allocation2]
        %v259 = vld [vmem:[%s258] sm:$0xf]
        %v260 = vld [vmem:[%s258 + $0x4] sm:$0xf]
        %v261 = vld [vmem:[%s258 + $0xc] sm:$0xf]
        %v262 = vld [vmem:[%s258 + $0x10] sm:$0xf]
        %v263 = vld [vmem:[%s258 + $0x18] sm:$0xf]
        %v264 = vld [vmem:[%s258 + $0x1c] sm:$0xf]
        %v265 = vld [vmem:[%s258 + $0x24] sm:$0xf]
        %v266 = vld [vmem:[%s258 + $0x28] sm:$0xf]
        %v267 = vld [vmem:[%s258 + $0x30] sm:$0xf]
        %v268 = vld [vmem:[%s258 + $0x34] sm:$0xf]
        %v269 = vld [vmem:[%s258 + $0x3c] sm:$0xf]
        %v270 = vld [vmem:[%s258 + $0x40] sm:$0xf]
        %v271 = vld [vmem:[%s258 + $0x48] sm:$0xf]
        %v272 = vld [vmem:[%s258 + $0x4c] sm:$0xf]
        %v273 = vld [vmem:[%s258 + $0x54] sm:$0xf]
        %v274 = vld [vmem:[%s258 + $0x58] sm:$0xf]
        %v275 = vld [vmem:[#allocation5] sm:$0x3]
        %v276 = vld [vmem:[%s258 + $0x8] sm:$0x1]
        %v277 = vld [vmem:[%s258 + $0x14] sm:$0x1]
        %v278 = vld [vmem:[%s258 + $0x20] sm:$0x1]
        %v279 = vld [vmem:[%s258 + $0x2c] sm:$0x1]
        %v280 = vld [vmem:[%s258 + $0x38] sm:$0x1]
        %v281 = vld [vmem:[%s258 + $0x44] sm:$0x1]
        %v282 = vld [vmem:[%s258 + $0x50] sm:$0x1]
        %v283 = vld [vmem:[%s258 + $0x5c] sm:$0x1]
        %vm284 = vsmask.f32 3328
        %vm285 = vsmask.f32 7440
        %vm286 = vmor %vm284, %vm285
        %v288 = vshrl.u32 %v259, 16
        %v290 = vrot.slane %v288, 4
        %v291 = vshll.u32 %v259, 16
        %v293 = vrot.slane %v291, 5
        %v294 = vor.u32 %v290, %v293
        %v295 = vrot.slane %v294, 4
        %v297 = vshll.u32 %v260, 16
        %v299 = vrot.slane %v297, 5
        %v300 = vsel %vm286, %v295, %v299
        %v301 = vshrl.u32 %v260, 16
        %v303 = vrot.slane %v301, 4
        %v304 = vor.u32 %v303, %v299
        %v305 = vrot.slane %v304, 4
        %v307 = vshll.u32 %v276, 16
        %v309 = vrot.slane %v307, 5
        %v310 = vsel %vm286, %v305, %v309
        %v312 = vshrl.u32 %v261, 16
        %v314 = vrot.slane %v312, 4
        %v315 = vshll.u32 %v261, 16
        %v317 = vrot.slane %v315, 5
        %v318 = vor.u32 %v314, %v317
        %v319 = vrot.slane %v318, 4
        %v321 = vshll.u32 %v262, 16
        %v323 = vrot.slane %v321, 5
        %v324 = vsel %vm286, %v319, %v323
        %v325 = vshrl.u32 %v262, 16
        %v327 = vrot.slane %v325, 4
        %v328 = vor.u32 %v327, %v323
        %v329 = vrot.slane %v328, 4
        %v331 = vshll.u32 %v277, 16
        %v333 = vrot.slane %v331, 5
        %v334 = vsel %vm286, %v329, %v333
        %v336 = vshrl.u32 %v263, 16
        %v338 = vrot.slane %v336, 4
        %v339 = vshll.u32 %v263, 16
        %v341 = vrot.slane %v339, 5
        %v342 = vor.u32 %v338, %v341
        %v343 = vrot.slane %v342, 4
        %v345 = vshll.u32 %v264, 16
        %v347 = vrot.slane %v345, 5
        %v348 = vsel %vm286, %v343, %v347
        %v349 = vshrl.u32 %v264, 16
        %v351 = vrot.slane %v349, 4
        %v352 = vor.u32 %v351, %v347
        %v353 = vrot.slane %v352, 4
        %v355 = vshll.u32 %v278, 16
        %v357 = vrot.slane %v355, 5
        %v358 = vsel %vm286, %v353, %v357
        %v360 = vshrl.u32 %v265, 16
        %v362 = vrot.slane %v360, 4
        %v363 = vshll.u32 %v265, 16
        %v365 = vrot.slane %v363, 5
        %v366 = vor.u32 %v362, %v365
        %v367 = vrot.slane %v366, 4
        %v369 = vshll.u32 %v266, 16
        %v371 = vrot.slane %v369, 5
        %v372 = vsel %vm286, %v367, %v371
        %v373 = vshrl.u32 %v266, 16
        %v375 = vrot.slane %v373, 4
        %v376 = vor.u32 %v375, %v371
        %v377 = vrot.slane %v376, 4
        %v379 = vshll.u32 %v279, 16
        %v381 = vrot.slane %v379, 5
        %v382 = vsel %vm286, %v377, %v381
        %v384 = vshrl.u32 %v267, 16
        %v386 = vrot.slane %v384, 4
        %v387 = vshll.u32 %v267, 16
        %v389 = vrot.slane %v387, 5
        %v390 = vor.u32 %v386, %v389
        %v391 = vrot.slane %v390, 4
        %v393 = vshll.u32 %v268, 16
        %v395 = vrot.slane %v393, 5
        %v396 = vsel %vm286, %v391, %v395
        %v397 = vshrl.u32 %v268, 16
        %v399 = vrot.slane %v397, 4
        %v400 = vor.u32 %v399, %v395
        %v401 = vrot.slane %v400, 4
        %v403 = vshll.u32 %v280, 16
        %v405 = vrot.slane %v403, 5
        %v406 = vsel %vm286, %v401, %v405
        %v408 = vshrl.u32 %v269, 16
        %v410 = vrot.slane %v408, 4
        %v411 = vshll.u32 %v269, 16
        %v413 = vrot.slane %v411, 5
        %v414 = vor.u32 %v410, %v413
        %v415 = vrot.slane %v414, 4
        %v417 = vshll.u32 %v270, 16
        %v419 = vrot.slane %v417, 5
        %v420 = vsel %vm286, %v415, %v419
        %v421 = vshrl.u32 %v270, 16
        %v423 = vrot.slane %v421, 4
        %v424 = vor.u32 %v423, %v419
        %v425 = vrot.slane %v424, 4
        %v427 = vshll.u32 %v281, 16
        %v429 = vrot.slane %v427, 5
        %v430 = vsel %vm286, %v425, %v429
        %v432 = vshrl.u32 %v271, 16
        %v434 = vrot.slane %v432, 4
        %v435 = vshll.u32 %v271, 16
        %v437 = vrot.slane %v435, 5
        %v438 = vor.u32 %v434, %v437
        %v439 = vrot.slane %v438, 4
        %v441 = vshll.u32 %v272, 16
        %v443 = vrot.slane %v441, 5
        %v444 = vsel %vm286, %v439, %v443
        %v445 = vshrl.u32 %v272, 16
        %v447 = vrot.slane %v445, 4
        %v448 = vor.u32 %v447, %v443
        %v449 = vrot.slane %v448, 4
        %v451 = vshll.u32 %v282, 16
        %v453 = vrot.slane %v451, 5
        %v454 = vsel %vm286, %v449, %v453
        %v456 = vshrl.u32 %v273, 16
        %v458 = vrot.slane %v456, 4
        %v459 = vshll.u32 %v273, 16
        %v461 = vrot.slane %v459, 5
        %v462 = vor.u32 %v458, %v461
        %v463 = vrot.slane %v462, 4
        %v465 = vshll.u32 %v274, 16
        %v467 = vrot.slane %v465, 5
        %v468 = vsel %vm286, %v463, %v467
        %v469 = vshrl.u32 %v274, 16
        %v471 = vrot.slane %v469, 4
        %v472 = vor.u32 %v471, %v467
        %v473 = vrot.slane %v472, 4
        %v475 = vshll.u32 %v283, 16
        %v477 = vrot.slane %v475, 5
        %v478 = vsel %vm286, %v473, %v477
        %v479 = vld [vmem:[#allocation5] sm:$0xc]
        %v480 = vunpack.c.l.b16 %v300
        %v481 = vunpack.c.l.b16 %v310
        %v482 = vunpack.c.l.b16 %v324
        %v483 = vunpack.c.l.b16 %v334
        %v484 = vunpack.c.l.b16 %v348
        %v485 = vunpack.c.l.b16 %v358
        %v486 = vunpack.c.l.b16 %v372
        %v487 = vunpack.c.l.b16 %v382
        %v488 = vunpack.c.l.b16 %v396
        %v489 = vunpack.c.l.b16 %v406
        %v490 = vunpack.c.l.b16 %v420
        %v491 = vunpack.c.l.b16 %v430
        %v492 = vunpack.c.l.b16 %v444
        %v493 = vunpack.c.l.b16 %v454
        %v494 = vunpack.c.l.b16 %v468
        %v495 = vunpack.c.l.b16 %v478
        %v496 = vpack.c.b16 %v481, %v480
        %v497 = vpack.c.b16 %v483, %v482
        %v498 = vpack.c.b16 %v485, %v484
        %v499 = vpack.c.b16 %v487, %v486
        %v500 = vpack.c.b16 %v489, %v488
        %v501 = vpack.c.b16 %v491, %v490
        %v502 = vpack.c.b16 %v493, %v492
        %v503 = vpack.c.b16 %v495, %v494
        %v505 = vunpack.c.l.b16 %v479
        %v506 = vpack.c.b16 %v505, %v505
        %v507 = vrot.slane %v506, 2
        %vm508 = vcmask 31744
        %v510 = vsel %vm508, %v496, 0
        %v513 = vsel %vm508, %v497, 0
        %v516 = vsel %vm508, %v498, 0
        %v519 = vsel %vm508, %v499, 0
        %v522 = vsel %vm508, %v500, 0
        %v525 = vsel %vm508, %v501, 0
        %v528 = vsel %vm508, %v502, 0
        %v531 = vsel %vm508, %v503, 0
        %vm533 = vcmask 1041408
        %v535 = vsel %vm533, %v507, 0
        %537 = vmatprep.subr.bf16.mxu0 0
        %538 = vmatpush1.bf16.msra.mxu0 %v535
        %539 = vmatprep.subr.bf16.mxu0 0
        %540 = vmatpush1.bf16.msra.mxu0 0
        %541 = vmatprep.subr.bf16.mxu0 0
        %542 = vmatpush1.bf16.msra.mxu0 0
        %543 = vmatprep.subr.bf16.mxu0 0
        %544 = vmatpush1.bf16.msra.mxu0 0
        %545 = vmatprep.subr.bf16.mxu0 0
        %546 = vmatpush1.bf16.msra.mxu0 0
        %547 = vmatprep.subr.bf16.mxu0 0
        %548 = vmatpush1.bf16.msra.mxu0 0
        %549 = vmatprep.subr.bf16.mxu0 0
        %550 = vmatpush1.bf16.msra.mxu0 0
        %551 = vmatprep.subr.bf16.mxu0 0
        %552 = vmatpush1.bf16.msra.mxu0 0
        %553 = vmatprep.subr.bf16.mxu0 0
        %554 = vmatpush1.bf16.msra.mxu0 0
        %555 = vmatprep.subr.bf16.mxu0 0
        %556 = vmatpush1.bf16.msra.mxu0 0
        %557 = vmatprep.subr.bf16.mxu0 0
        %558 = vmatpush1.bf16.msra.mxu0 0
        %559 = vmatprep.subr.bf16.mxu0 0
        %560 = vmatpush1.bf16.msra.mxu0 0
        %561 = vmatprep.subr.bf16.mxu0 0
        %562 = vmatpush1.bf16.msra.mxu0 0
        %563 = vmatprep.subr.bf16.mxu0 0
        %564 = vmatpush1.bf16.msra.mxu0 0
        %565 = vmatprep.subr.bf16.mxu0 0
        %566 = vmatpush1.bf16.msra.mxu0 0
        %567 = vmatprep.subr.bf16.mxu0 0
        %568 = vmatpush1.bf16.msra.mxu0 0
        %569 = vmatprep.mubr.bf16.mxu0 0
        %570 = vmatmul.mubr.bf16.gmra.mrb[0].mxu0 %v510
        %v571 = vpop.f32.mrb[0].mxu0
        %v572 = vadd.f32 0.0, %v571
        %v573 = vpop.f32.mrb[0].mxu0
        %v574 = vpop.f32.mrb[0].mxu0
        %v575 = vadd.f32 0.0, %v574
        %v576 = vpop.f32.mrb[0].mxu0
        %577 = vmatprep.mubr.bf16.mxu0 0
        %578 = vmatmul.mubr.bf16.gmra.mrb[0].mxu0 %v513
        %v579 = vpop.f32.mrb[0].mxu0
        %v580 = vadd.f32 0.0, %v579
        %v581 = vpop.f32.mrb[0].mxu0
        %v582 = vpop.f32.mrb[0].mxu0
        %v583 = vadd.f32 0.0, %v582
        %v584 = vpop.f32.mrb[0].mxu0
        %585 = vmatprep.mubr.bf16.mxu0 0
        %586 = vmatmul.mubr.bf16.gmra.mrb[0].mxu0 %v516
        %v587 = vpop.f32.mrb[0].mxu0
        %v588 = vadd.f32 0.0, %v587
        %v589 = vpop.f32.mrb[0].mxu0
        %v590 = vpop.f32.mrb[0].mxu0
        %v591 = vadd.f32 0.0, %v590
        %v592 = vpop.f32.mrb[0].mxu0
        %593 = vmatprep.mubr.bf16.mxu0 0
        %594 = vmatmul.mubr.bf16.gmra.mrb[0].mxu0 %v519
        %v595 = vpop.f32.mrb[0].mxu0
        %v596 = vadd.f32 0.0, %v595
        %v597 = vpop.f32.mrb[0].mxu0
        %v598 = vpop.f32.mrb[0].mxu0
        %v599 = vadd.f32 0.0, %v598
        %v600 = vpop.f32.mrb[0].mxu0
        %601 = vmatprep.mubr.bf16.mxu0 0
        %602 = vmatmul.mubr.bf16.gmra.mrb[0].mxu0 %v522
        %v603 = vpop.f32.mrb[0].mxu0
        %v604 = vadd.f32 0.0, %v603
        %v605 = vpop.f32.mrb[0].mxu0
        %v606 = vpop.f32.mrb[0].mxu0
        %v607 = vadd.f32 0.0, %v606
        %v608 = vpop.f32.mrb[0].mxu0
        %609 = vmatprep.mubr.bf16.mxu0 0
        %610 = vmatmul.mubr.bf16.gmra.mrb[0].mxu0 %v525
        %v611 = vpop.f32.mrb[0].mxu0
        %v612 = vadd.f32 0.0, %v611
        %v613 = vpop.f32.mrb[0].mxu0
        %v614 = vpop.f32.mrb[0].mxu0
        %v615 = vadd.f32 0.0, %v614
        %v616 = vpop.f32.mrb[0].mxu0
        %617 = vmatprep.mubr.bf16.mxu0 0
        %618 = vmatmul.mubr.bf16.gmra.mrb[0].mxu0 %v528
        %v619 = vpop.f32.mrb[0].mxu0
        %v620 = vadd.f32 0.0, %v619
        %v621 = vpop.f32.mrb[0].mxu0
        %v622 = vpop.f32.mrb[0].mxu0
        %v623 = vadd.f32 0.0, %v622
        %v624 = vpop.f32.mrb[0].mxu0
        %625 = vmatprep.mubr.bf16.mxu0 0
        %626 = vmatmul.mubr.bf16.gmra.mrb[0].mxu0 %v531
        %v627 = vpop.f32.mrb[0].mxu0
        %v628 = vadd.f32 0.0, %v627
        %v629 = vpop.f32.mrb[0].mxu0
        %v630 = vpop.f32.mrb[0].mxu0
        %v631 = vadd.f32 0.0, %v630
        %v632 = vpop.f32.mrb[0].mxu0
        %633 = vdwg.mxu0
        %v650 = vunpack.c.l.b16 %v259
        %v651 = vunpack.c.l.b16 %v260
        %v652 = vunpack.c.l.b16 %v261
        %v653 = vunpack.c.l.b16 %v262
        %v654 = vunpack.c.l.b16 %v263
        %v655 = vunpack.c.l.b16 %v264
        %v656 = vunpack.c.l.b16 %v265
        %v657 = vunpack.c.l.b16 %v266
        %v658 = vunpack.c.l.b16 %v267
        %v659 = vunpack.c.l.b16 %v268
        %v660 = vunpack.c.l.b16 %v269
        %v661 = vunpack.c.l.b16 %v270
        %v662 = vunpack.c.l.b16 %v271
        %v663 = vunpack.c.l.b16 %v272
        %v664 = vunpack.c.l.b16 %v273
        %v665 = vunpack.c.l.b16 %v274
        %v666 = vpack.c.b16 %v651, %v650
        %v667 = vpack.c.b16 %v653, %v652
        %v668 = vpack.c.b16 %v655, %v654
        %v669 = vpack.c.b16 %v657, %v656
        %v670 = vpack.c.b16 %v659, %v658
        %v671 = vpack.c.b16 %v661, %v660
        %v672 = vpack.c.b16 %v663, %v662
        %v673 = vpack.c.b16 %v665, %v664
        %v675 = vsel %vm508, %v666, 0
        %v678 = vsel %vm508, %v667, 0
        %v681 = vsel %vm508, %v668, 0
        %v684 = vsel %vm508, %v669, 0
        %v687 = vsel %vm508, %v670, 0
        %v690 = vsel %vm508, %v671, 0
        %v693 = vsel %vm508, %v672, 0
        %v696 = vsel %vm508, %v673, 0
        %v699 = vsel %vm533, %v275, 0
        %701 = vmatprep.subr.bf16.mxu0 0
        %702 = vmatpush1.bf16.msra.mxu0 %v699
        %703 = vmatprep.subr.bf16.mxu0 0
        %704 = vmatpush1.bf16.msra.mxu0 0
        %705 = vmatprep.subr.bf16.mxu0 0
        %706 = vmatpush1.bf16.msra.mxu0 0
        %707 = vmatprep.subr.bf16.mxu0 0
        %708 = vmatpush1.bf16.msra.mxu0 0
        %709 = vmatprep.subr.bf16.mxu0 0
        %710 = vmatpush1.bf16.msra.mxu0 0
        %711 = vmatprep.subr.bf16.mxu0 0
        %712 = vmatpush1.bf16.msra.mxu0 0
        %713 = vmatprep.subr.bf16.mxu0 0
        %714 = vmatpush1.bf16.msra.mxu0 0
        %715 = vmatprep.subr.bf16.mxu0 0
        %716 = vmatpush1.bf16.msra.mxu0 0
        %717 = vmatprep.subr.bf16.mxu0 0
        %718 = vmatpush1.bf16.msra.mxu0 0
        %719 = vmatprep.subr.bf16.mxu0 0
        %720 = vmatpush1.bf16.msra.mxu0 0
        %721 = vmatprep.subr.bf16.mxu0 0
        %722 = vmatpush1.bf16.msra.mxu0 0
        %723 = vmatprep.subr.bf16.mxu0 0
        %724 = vmatpush1.bf16.msra.mxu0 0
        %725 = vmatprep.subr.bf16.mxu0 0
        %726 = vmatpush1.bf16.msra.mxu0 0
        %727 = vmatprep.subr.bf16.mxu0 0
        %728 = vmatpush1.bf16.msra.mxu0 0
        %729 = vmatprep.subr.bf16.mxu0 0
        %730 = vmatpush1.bf16.msra.mxu0 0
        %731 = vmatprep.subr.bf16.mxu0 0
        %732 = vmatpush1.bf16.msra.mxu0 0
        %733 = vmatprep.mubr.bf16.mxu0 0
        %734 = vmatmul.mubr.bf16.gmra.mrb[0].mxu0 %v675
        %v735 = vpop.f32.mrb[0].mxu0
        %v736 = vadd.f32 %v572, %v735
        %v737 = vpop.f32.mrb[0].mxu0
        %v738 = vpop.f32.mrb[0].mxu0
        %v739 = vadd.f32 %v575, %v738
        %v740 = vpop.f32.mrb[0].mxu0
        %741 = vmatprep.mubr.bf16.mxu0 0
        %742 = vmatmul.mubr.bf16.gmra.mrb[0].mxu0 %v678
        %v743 = vpop.f32.mrb[0].mxu0
        %v744 = vadd.f32 %v580, %v743
        %v745 = vpop.f32.mrb[0].mxu0
        %v746 = vpop.f32.mrb[0].mxu0
        %v747 = vadd.f32 %v583, %v746
        %v748 = vpop.f32.mrb[0].mxu0
        %749 = vmatprep.mubr.bf16.mxu0 0
        %750 = vmatmul.mubr.bf16.gmra.mrb[0].mxu0 %v681
        %v751 = vpop.f32.mrb[0].mxu0
        %v752 = vadd.f32 %v588, %v751
        %v753 = vpop.f32.mrb[0].mxu0
        %v754 = vpop.f32.mrb[0].mxu0
        %v755 = vadd.f32 %v591, %v754
        %v756 = vpop.f32.mrb[0].mxu0
        %757 = vmatprep.mubr.bf16.mxu0 0
        %758 = vmatmul.mubr.bf16.gmra.mrb[0].mxu0 %v684
        %v759 = vpop.f32.mrb[0].mxu0
        %v760 = vadd.f32 %v596, %v759
        %v761 = vpop.f32.mrb[0].mxu0
        %v762 = vpop.f32.mrb[0].mxu0
        %v763 = vadd.f32 %v599, %v762
        %v764 = vpop.f32.mrb[0].mxu0
        %765 = vmatprep.mubr.bf16.mxu0 0
        %766 = vmatmul.mubr.bf16.gmra.mrb[0].mxu0 %v687
        %v767 = vpop.f32.mrb[0].mxu0
        %v768 = vadd.f32 %v604, %v767
        %v769 = vpop.f32.mrb[0].mxu0
        %v770 = vpop.f32.mrb[0].mxu0
        %v771 = vadd.f32 %v607, %v770
        %v772 = vpop.f32.mrb[0].mxu0
        %773 = vmatprep.mubr.bf16.mxu0 0
        %774 = vmatmul.mubr.bf16.gmra.mrb[0].mxu0 %v690
        %v775 = vpop.f32.mrb[0].mxu0
        %v776 = vadd.f32 %v612, %v775
        %v777 = vpop.f32.mrb[0].mxu0
        %v778 = vpop.f32.mrb[0].mxu0
        %v779 = vadd.f32 %v615, %v778
        %v780 = vpop.f32.mrb[0].mxu0
        %781 = vmatprep.mubr.bf16.mxu0 0
        %782 = vmatmul.mubr.bf16.gmra.mrb[0].mxu0 %v693
        %v783 = vpop.f32.mrb[0].mxu0
        %v784 = vadd.f32 %v620, %v783
        %v785 = vpop.f32.mrb[0].mxu0
        %v786 = vpop.f32.mrb[0].mxu0
        %v787 = vadd.f32 %v623, %v786
        %v788 = vpop.f32.mrb[0].mxu0
        %789 = vmatprep.mubr.bf16.mxu0 0
        %790 = vmatmul.mubr.bf16.gmra.mrb[0].mxu0 %v696
        %v791 = vpop.f32.mrb[0].mxu0
        %v792 = vadd.f32 %v628, %v791
        %v793 = vpop.f32.mrb[0].mxu0
        %v794 = vpop.f32.mrb[0].mxu0
        %v795 = vadd.f32 %v631, %v794
        %v796 = vpop.f32.mrb[0].mxu0
        %797 = vdwg.mxu0
        %v798 = vld [vmem:[%s258] sm:$0xe]
        %v799 = vld [vmem:[%s258 + $0xc] sm:$0xe]
        %v800 = vld [vmem:[%s258 + $0x18] sm:$0xe]
        %v801 = vld [vmem:[%s258 + $0x24] sm:$0xe]
        %v802 = vld [vmem:[%s258 + $0x30] sm:$0xe]
        %v803 = vld [vmem:[%s258 + $0x3c] sm:$0xe]
        %v804 = vld [vmem:[%s258 + $0x48] sm:$0xe]
        %v805 = vld [vmem:[%s258 + $0x54] sm:$0xe]
        %vm822 = vcmask 1042432
        %vm823 = vcmask 1046532
        %vm824 = vmor %vm822, %vm823
        %v825 = vrot.slane %v798, 5
        %v826 = vrot.slane %v825, 4
        %v827 = vrot.slane %v260, 5
        %v828 = vsel %vm824, %v826, %v827
        %v829 = vrot.slane %v827, 4
        %v830 = vrot.slane %v276, 5
        %v831 = vsel %vm824, %v829, %v830
        %v832 = vrot.slane %v799, 5
        %v833 = vrot.slane %v832, 4
        %v834 = vrot.slane %v262, 5
        %v835 = vsel %vm824, %v833, %v834
        %v836 = vrot.slane %v834, 4
        %v837 = vrot.slane %v277, 5
        %v838 = vsel %vm824, %v836, %v837
        %v839 = vrot.slane %v800, 5
        %v840 = vrot.slane %v839, 4
        %v841 = vrot.slane %v264, 5
        %v842 = vsel %vm824, %v840, %v841
        %v843 = vrot.slane %v841, 4
        %v844 = vrot.slane %v278, 5
        %v845 = vsel %vm824, %v843, %v844
        %v846 = vrot.slane %v801, 5
        %v847 = vrot.slane %v846, 4
        %v848 = vrot.slane %v266, 5
        %v849 = vsel %vm824, %v847, %v848
        %v850 = vrot.slane %v848, 4
        %v851 = vrot.slane %v279, 5
        %v852 = vsel %vm824, %v850, %v851
        %v853 = vrot.slane %v802, 5
        %v854 = vrot.slane %v853, 4
        %v855 = vrot.slane %v268, 5
        %v856 = vsel %vm824, %v854, %v855
        %v857 = vrot.slane %v855, 4
        %v858 = vrot.slane %v280, 5
        %v859 = vsel %vm824, %v857, %v858
        %v860 = vrot.slane %v803, 5
        %v861 = vrot.slane %v860, 4
        %v862 = vrot.slane %v270, 5
        %v863 = vsel %vm824, %v861, %v862
        %v864 = vrot.slane %v862, 4
        %v865 = vrot.slane %v281, 5
        %v866 = vsel %vm824, %v864, %v865
        %v867 = vrot.slane %v804, 5
        %v868 = vrot.slane %v867, 4
        %v869 = vrot.slane %v272, 5
        %v870 = vsel %vm824, %v868, %v869
        %v871 = vrot.slane %v869, 4
        %v872 = vrot.slane %v282, 5
        %v873 = vsel %vm824, %v871, %v872
        %v874 = vrot.slane %v805, 5
        %v875 = vrot.slane %v874, 4
        %v876 = vrot.slane %v274, 5
        %v877 = vsel %vm824, %v875, %v876
        %v878 = vrot.slane %v876, 4
        %v879 = vrot.slane %v283, 5
        %v880 = vsel %vm824, %v878, %v879
        %v881 = vld [vmem:[#allocation5 + $0x4] sm:$0x3]
        %v882 = vunpack.c.l.b16 %v828
        %v883 = vunpack.c.l.b16 %v831
        %v884 = vunpack.c.l.b16 %v835
        %v885 = vunpack.c.l.b16 %v838
        %v886 = vunpack.c.l.b16 %v842
        %v887 = vunpack.c.l.b16 %v845
        %v888 = vunpack.c.l.b16 %v849
        %v889 = vunpack.c.l.b16 %v852
        %v890 = vunpack.c.l.b16 %v856
        %v891 = vunpack.c.l.b16 %v859
        %v892 = vunpack.c.l.b16 %v863
        %v893 = vunpack.c.l.b16 %v866
        %v894 = vunpack.c.l.b16 %v870
        %v895 = vunpack.c.l.b16 %v873
        %v896 = vunpack.c.l.b16 %v877
        %v897 = vunpack.c.l.b16 %v880
        %v898 = vpack.c.b16 %v883, %v882
        %v899 = vpack.c.b16 %v885, %v884
        %v900 = vpack.c.b16 %v887, %v886
        %v901 = vpack.c.b16 %v889, %v888
        %v902 = vpack.c.b16 %v891, %v890
        %v903 = vpack.c.b16 %v893, %v892
        %v904 = vpack.c.b16 %v895, %v894
        %v905 = vpack.c.b16 %v897, %v896
        %v907 = vsel %vm508, %v898, 0
        %v910 = vsel %vm508, %v899, 0
        %v913 = vsel %vm508, %v900, 0
        %v916 = vsel %vm508, %v901, 0
        %v919 = vsel %vm508, %v902, 0
        %v922 = vsel %vm508, %v903, 0
        %v925 = vsel %vm508, %v904, 0
        %v928 = vsel %vm508, %v905, 0
        %v931 = vsel %vm533, %v881, 0
        %933 = vmatprep.subr.bf16.mxu0 0
        %934 = vmatpush1.bf16.msra.mxu0 %v931
        %935 = vmatprep.subr.bf16.mxu0 0
        %936 = vmatpush1.bf16.msra.mxu0 0
        %937 = vmatprep.subr.bf16.mxu0 0
        %938 = vmatpush1.bf16.msra.mxu0 0
        %939 = vmatprep.subr.bf16.mxu0 0
        %940 = vmatpush1.bf16.msra.mxu0 0
        %941 = vmatprep.subr.bf16.mxu0 0
        %942 = vmatpush1.bf16.msra.mxu0 0
        %943 = vmatprep.subr.bf16.mxu0 0
        %944 = vmatpush1.bf16.msra.mxu0 0
        %945 = vmatprep.subr.bf16.mxu0 0
        %946 = vmatpush1.bf16.msra.mxu0 0
        %947 = vmatprep.subr.bf16.mxu0 0
        %948 = vmatpush1.bf16.msra.mxu0 0
        %949 = vmatprep.subr.bf16.mxu0 0
        %950 = vmatpush1.bf16.msra.mxu0 0
        %951 = vmatprep.subr.bf16.mxu0 0
        %952 = vmatpush1.bf16.msra.mxu0 0
        %953 = vmatprep.subr.bf16.mxu0 0
        %954 = vmatpush1.bf16.msra.mxu0 0
        %955 = vmatprep.subr.bf16.mxu0 0
        %956 = vmatpush1.bf16.msra.mxu0 0
        %957 = vmatprep.subr.bf16.mxu0 0
        %958 = vmatpush1.bf16.msra.mxu0 0
        %959 = vmatprep.subr.bf16.mxu0 0
        %960 = vmatpush1.bf16.msra.mxu0 0
        %961 = vmatprep.subr.bf16.mxu0 0
        %962 = vmatpush1.bf16.msra.mxu0 0
        %963 = vmatprep.subr.bf16.mxu0 0
        %964 = vmatpush1.bf16.msra.mxu0 0
        %965 = vmatprep.mubr.bf16.mxu0 0
        %966 = vmatmul.mubr.bf16.gmra.mrb[0].mxu0 %v907
        %v967 = vpop.f32.mrb[0].mxu0
        %v968 = vadd.f32 0.0, %v967
        %v969 = vpop.f32.mrb[0].mxu0
        %v970 = vpop.f32.mrb[0].mxu0
        %v971 = vadd.f32 0.0, %v970
        %v972 = vpop.f32.mrb[0].mxu0
        %973 = vmatprep.mubr.bf16.mxu0 0
        %974 = vmatmul.mubr.bf16.gmra.mrb[0].mxu0 %v910
        %v975 = vpop.f32.mrb[0].mxu0
        %v976 = vadd.f32 0.0, %v975
        %v977 = vpop.f32.mrb[0].mxu0
        %v978 = vpop.f32.mrb[0].mxu0
        %v979 = vadd.f32 0.0, %v978
        %v980 = vpop.f32.mrb[0].mxu0
        %981 = vmatprep.mubr.bf16.mxu0 0
        %982 = vmatmul.mubr.bf16.gmra.mrb[0].mxu0 %v913
        %v983 = vpop.f32.mrb[0].mxu0
        %v984 = vadd.f32 0.0, %v983
        %v985 = vpop.f32.mrb[0].mxu0
        %v986 = vpop.f32.mrb[0].mxu0
        %v987 = vadd.f32 0.0, %v986
        %v988 = vpop.f32.mrb[0].mxu0
        %989 = vmatprep.mubr.bf16.mxu0 0
        %990 = vmatmul.mubr.bf16.gmra.mrb[0].mxu0 %v916
        %v991 = vpop.f32.mrb[0].mxu0
        %v992 = vadd.f32 0.0, %v991
        %v993 = vpop.f32.mrb[0].mxu0
        %v994 = vpop.f32.mrb[0].mxu0
        %v995 = vadd.f32 0.0, %v994
        %v996 = vpop.f32.mrb[0].mxu0
        %997 = vmatprep.mubr.bf16.mxu0 0
        %998 = vmatmul.mubr.bf16.gmra.mrb[0].mxu0 %v919
        %v999 = vpop.f32.mrb[0].mxu0
        %v1000 = vadd.f32 0.0, %v999
        %v1001 = vpop.f32.mrb[0].mxu0
        %v1002 = vpop.f32.mrb[0].mxu0
        %v1003 = vadd.f32 0.0, %v1002
        %v1004 = vpop.f32.mrb[0].mxu0
        %1005 = vmatprep.mubr.bf16.mxu0 0
        %1006 = vmatmul.mubr.bf16.gmra.mrb[0].mxu0 %v922
        %v1007 = vpop.f32.mrb[0].mxu0
        %v1008 = vadd.f32 0.0, %v1007
        %v1009 = vpop.f32.mrb[0].mxu0
        %v1010 = vpop.f32.mrb[0].mxu0
        %v1011 = vadd.f32 0.0, %v1010
        %v1012 = vpop.f32.mrb[0].mxu0
        %1013 = vmatprep.mubr.bf16.mxu0 0
        %1014 = vmatmul.mubr.bf16.gmra.mrb[0].mxu0 %v925
        %v1015 = vpop.f32.mrb[0].mxu0
        %v1016 = vadd.f32 0.0, %v1015
        %v1017 = vpop.f32.mrb[0].mxu0
        %v1018 = vpop.f32.mrb[0].mxu0
        %v1019 = vadd.f32 0.0, %v1018
        %v1020 = vpop.f32.mrb[0].mxu0
        %1021 = vmatprep.mubr.bf16.mxu0 0
        %1022 = vmatmul.mubr.bf16.gmra.mrb[0].mxu0 %v928
        %v1023 = vpop.f32.mrb[0].mxu0
        %v1024 = vadd.f32 0.0, %v1023
        %v1025 = vpop.f32.mrb[0].mxu0
        %v1026 = vpop.f32.mrb[0].mxu0
        %v1027 = vadd.f32 0.0, %v1026
        %v1028 = vpop.f32.mrb[0].mxu0
        %1029 = vdwg.mxu0
        %v1030 = vadd.f32 %v736, %v968
        %v1031 = vadd.f32 %v739, %v971
        %v1032 = vadd.f32 %v744, %v976
        %v1033 = vadd.f32 %v747, %v979
        %v1034 = vadd.f32 %v752, %v984
        %v1035 = vadd.f32 %v755, %v987
        %v1036 = vadd.f32 %v760, %v992
        %v1037 = vadd.f32 %v763, %v995
        %v1038 = vadd.f32 %v768, %v1000
        %v1039 = vadd.f32 %v771, %v1003
        %v1040 = vadd.f32 %v776, %v1008
        %v1041 = vadd.f32 %v779, %v1011
        %v1042 = vadd.f32 %v784, %v1016
        %v1043 = vadd.f32 %v787, %v1019
        %v1044 = vadd.f32 %v792, %v1024
        %v1045 = vadd.f32 %v795, %v1027
        %s1046 = sadd.s32 %s255, 1
        %s1047 = smul.u32 %s1046, 3
        %s1048 = smul.addr %s1047, 4
        %s1049 = scalar_lea.vmem %s222, %s1048 [#allocation2]
        %v1050 = vld [vmem:[%s1049] sm:$0xf]
        %v1051 = vld [vmem:[%s1049 + $0x4] sm:$0xf]
        %v1052 = vld [vmem:[%s1049 + $0xc] sm:$0xf]
        %v1053 = vld [vmem:[%s1049 + $0x10] sm:$0xf]
        %v1054 = vld [vmem:[%s1049 + $0x18] sm:$0xf]
        %v1055 = vld [vmem:[%s1049 + $0x1c] sm:$0xf]
        %v1056 = vld [vmem:[%s1049 + $0x24] sm:$0xf]
        %v1057 = vld [vmem:[%s1049 + $0x28] sm:$0xf]
        %v1058 = vld [vmem:[%s1049 + $0x30] sm:$0xf]
        %v1059 = vld [vmem:[%s1049 + $0x34] sm:$0xf]
        %v1060 = vld [vmem:[%s1049 + $0x3c] sm:$0xf]
        %v1061 = vld [vmem:[%s1049 + $0x40] sm:$0xf]
        %v1062 = vld [vmem:[%s1049 + $0x48] sm:$0xf]
        %v1063 = vld [vmem:[%s1049 + $0x4c] sm:$0xf]
        %v1064 = vld [vmem:[%s1049 + $0x54] sm:$0xf]
        %v1065 = vld [vmem:[%s1049 + $0x58] sm:$0xf]
        %v1066 = vld [vmem:[#allocation5 + $0x4] sm:$0xc]
        %v1083 = vunpack.c.l.b16 %v1050
        %v1084 = vunpack.c.l.b16 %v1051
        %v1085 = vunpack.c.l.b16 %v1052
        %v1086 = vunpack.c.l.b16 %v1053
        %v1087 = vunpack.c.l.b16 %v1054
        %v1088 = vunpack.c.l.b16 %v1055
        %v1089 = vunpack.c.l.b16 %v1056
        %v1090 = vunpack.c.l.b16 %v1057
        %v1091 = vunpack.c.l.b16 %v1058
        %v1092 = vunpack.c.l.b16 %v1059
        %v1093 = vunpack.c.l.b16 %v1060
        %v1094 = vunpack.c.l.b16 %v1061
        %v1095 = vunpack.c.l.b16 %v1062
        %v1096 = vunpack.c.l.b16 %v1063
        %v1097 = vunpack.c.l.b16 %v1064
        %v1098 = vunpack.c.l.b16 %v1065
        %v1099 = vpack.c.b16 %v1084, %v1083
        %v1100 = vpack.c.b16 %v1086, %v1085
        %v1101 = vpack.c.b16 %v1088, %v1087
        %v1102 = vpack.c.b16 %v1090, %v1089
        %v1103 = vpack.c.b16 %v1092, %v1091
        %v1104 = vpack.c.b16 %v1094, %v1093
        %v1105 = vpack.c.b16 %v1096, %v1095
        %v1106 = vpack.c.b16 %v1098, %v1097
        %v1108 = vunpack.c.l.b16 %v1066
        %v1109 = vpack.c.b16 %v1108, %v1108
        %v1110 = vrot.slane %v1109, 2
        %v1112 = vsel %vm508, %v1099, 0
        %v1115 = vsel %vm508, %v1100, 0
        %v1118 = vsel %vm508, %v1101, 0
        %v1121 = vsel %vm508, %v1102, 0
        %v1124 = vsel %vm508, %v1103, 0
        %v1127 = vsel %vm508, %v1104, 0
        %v1130 = vsel %vm508, %v1105, 0
        %v1133 = vsel %vm508, %v1106, 0
        %v1136 = vsel %vm533, %v1110, 0
        %1138 = vmatprep.subr.bf16.mxu0 0
        %1139 = vmatpush1.bf16.msra.mxu0 %v1136
        %1140 = vmatprep.subr.bf16.mxu0 0
        %1141 = vmatpush1.bf16.msra.mxu0 0
        %1142 = vmatprep.subr.bf16.mxu0 0
        %1143 = vmatpush1.bf16.msra.mxu0 0
        %1144 = vmatprep.subr.bf16.mxu0 0
        %1145 = vmatpush1.bf16.msra.mxu0 0
        %1146 = vmatprep.subr.bf16.mxu0 0
        %1147 = vmatpush1.bf16.msra.mxu0 0
        %1148 = vmatprep.subr.bf16.mxu0 0
        %1149 = vmatpush1.bf16.msra.mxu0 0
        %1150 = vmatprep.subr.bf16.mxu0 0
        %1151 = vmatpush1.bf16.msra.mxu0 0
        %1152 = vmatprep.subr.bf16.mxu0 0
        %1153 = vmatpush1.bf16.msra.mxu0 0
        %1154 = vmatprep.subr.bf16.mxu0 0
        %1155 = vmatpush1.bf16.msra.mxu0 0
        %1156 = vmatprep.subr.bf16.mxu0 0
        %1157 = vmatpush1.bf16.msra.mxu0 0
        %1158 = vmatprep.subr.bf16.mxu0 0
        %1159 = vmatpush1.bf16.msra.mxu0 0
        %1160 = vmatprep.subr.bf16.mxu0 0
        %1161 = vmatpush1.bf16.msra.mxu0 0
        %1162 = vmatprep.subr.bf16.mxu0 0
        %1163 = vmatpush1.bf16.msra.mxu0 0
        %1164 = vmatprep.subr.bf16.mxu0 0
        %1165 = vmatpush1.bf16.msra.mxu0 0
        %1166 = vmatprep.subr.bf16.mxu0 0
        %1167 = vmatpush1.bf16.msra.mxu0 0
        %1168 = vmatprep.subr.bf16.mxu0 0
        %1169 = vmatpush1.bf16.msra.mxu0 0
        %1170 = vmatprep.mubr.bf16.mxu0 0
        %1171 = vmatmul.mubr.bf16.gmra.mrb[0].mxu0 %v1112
        %v1172 = vpop.f32.mrb[0].mxu0
        %v1173 = vadd.f32 0.0, %v1172
        %v1174 = vpop.f32.mrb[0].mxu0
        %v1175 = vpop.f32.mrb[0].mxu0
        %v1176 = vadd.f32 0.0, %v1175
        %v1177 = vpop.f32.mrb[0].mxu0
        %1178 = vmatprep.mubr.bf16.mxu0 0
        %1179 = vmatmul.mubr.bf16.gmra.mrb[0].mxu0 %v1115
        %v1180 = vpop.f32.mrb[0].mxu0
        %v1181 = vadd.f32 0.0, %v1180
        %v1182 = vpop.f32.mrb[0].mxu0
        %v1183 = vpop.f32.mrb[0].mxu0
        %v1184 = vadd.f32 0.0, %v1183
        %v1185 = vpop.f32.mrb[0].mxu0
        %1186 = vmatprep.mubr.bf16.mxu0 0
        %1187 = vmatmul.mubr.bf16.gmra.mrb[0].mxu0 %v1118
        %v1188 = vpop.f32.mrb[0].mxu0
        %v1189 = vadd.f32 0.0, %v1188
        %v1190 = vpop.f32.mrb[0].mxu0
        %v1191 = vpop.f32.mrb[0].mxu0
        %v1192 = vadd.f32 0.0, %v1191
        %v1193 = vpop.f32.mrb[0].mxu0
        %1194 = vmatprep.mubr.bf16.mxu0 0
        %1195 = vmatmul.mubr.bf16.gmra.mrb[0].mxu0 %v1121
        %v1196 = vpop.f32.mrb[0].mxu0
        %v1197 = vadd.f32 0.0, %v1196
        %v1198 = vpop.f32.mrb[0].mxu0
        %v1199 = vpop.f32.mrb[0].mxu0
        %v1200 = vadd.f32 0.0, %v1199
        %v1201 = vpop.f32.mrb[0].mxu0
        %1202 = vmatprep.mubr.bf16.mxu0 0
        %1203 = vmatmul.mubr.bf16.gmra.mrb[0].mxu0 %v1124
        %v1204 = vpop.f32.mrb[0].mxu0
        %v1205 = vadd.f32 0.0, %v1204
        %v1206 = vpop.f32.mrb[0].mxu0
        %v1207 = vpop.f32.mrb[0].mxu0
        %v1208 = vadd.f32 0.0, %v1207
        %v1209 = vpop.f32.mrb[0].mxu0
        %1210 = vmatprep.mubr.bf16.mxu0 0
        %1211 = vmatmul.mubr.bf16.gmra.mrb[0].mxu0 %v1127
        %v1212 = vpop.f32.mrb[0].mxu0
        %v1213 = vadd.f32 0.0, %v1212
        %v1214 = vpop.f32.mrb[0].mxu0
        %v1215 = vpop.f32.mrb[0].mxu0
        %v1216 = vadd.f32 0.0, %v1215
        %v1217 = vpop.f32.mrb[0].mxu0
        %1218 = vmatprep.mubr.bf16.mxu0 0
        %1219 = vmatmul.mubr.bf16.gmra.mrb[0].mxu0 %v1130
        %v1220 = vpop.f32.mrb[0].mxu0
        %v1221 = vadd.f32 0.0, %v1220
        %v1222 = vpop.f32.mrb[0].mxu0
        %v1223 = vpop.f32.mrb[0].mxu0
        %v1224 = vadd.f32 0.0, %v1223
        %v1225 = vpop.f32.mrb[0].mxu0
        %1226 = vmatprep.mubr.bf16.mxu0 0
        %1227 = vmatmul.mubr.bf16.gmra.mrb[0].mxu0 %v1133
        %v1228 = vpop.f32.mrb[0].mxu0
        %v1229 = vadd.f32 0.0, %v1228
        %v1230 = vpop.f32.mrb[0].mxu0
        %v1231 = vpop.f32.mrb[0].mxu0
        %v1232 = vadd.f32 0.0, %v1231
        %v1233 = vpop.f32.mrb[0].mxu0
        %1234 = vdwg.mxu0
        %v1235 = vadd.f32 %v1030, %v1173
        %v1236 = vadd.f32 %v1031, %v1176
        %v1237 = vadd.f32 %v1032, %v1181
        %v1238 = vadd.f32 %v1033, %v1184
        %v1239 = vadd.f32 %v1034, %v1189
        %v1240 = vadd.f32 %v1035, %v1192
        %v1241 = vadd.f32 %v1036, %v1197
        %v1242 = vadd.f32 %v1037, %v1200
        %v1243 = vadd.f32 %v1038, %v1205
        %v1244 = vadd.f32 %v1039, %v1208
        %v1245 = vadd.f32 %v1040, %v1213
        %v1246 = vadd.f32 %v1041, %v1216
        %v1247 = vadd.f32 %v1042, %v1221
        %v1248 = vadd.f32 %v1043, %v1224
        %v1249 = vadd.f32 %v1044, %v1229
        %v1250 = vadd.f32 %v1045, %v1232
        %v1251 = vld [vmem:[%s1049] sm:$0xf]
        %v1252 = vld [vmem:[%s1049 + $0x4] sm:$0xf]
        %v1253 = vld [vmem:[%s1049 + $0x8] sm:$0x1]
        %v1254 = vld [vmem:[%s1049 + $0xc] sm:$0xf]
        %v1255 = vld [vmem:[%s1049 + $0x10] sm:$0xf]
        %v1256 = vld [vmem:[%s1049 + $0x14] sm:$0x1]
        %v1257 = vld [vmem:[%s1049 + $0x18] sm:$0xf]
        %v1258 = vld [vmem:[%s1049 + $0x1c] sm:$0xf]
        %v1259 = vld [vmem:[%s1049 + $0x20] sm:$0x1]
        %v1260 = vld [vmem:[%s1049 + $0x24] sm:$0xf]
        %v1261 = vld [vmem:[%s1049 + $0x28] sm:$0xf]
        %v1262 = vld [vmem:[%s1049 + $0x2c] sm:$0x1]
        %v1263 = vld [vmem:[%s1049 + $0x30] sm:$0xf]
        %v1264 = vld [vmem:[%s1049 + $0x34] sm:$0xf]
        %v1265 = vld [vmem:[%s1049 + $0x38] sm:$0x1]
        %v1266 = vld [vmem:[%s1049 + $0x3c] sm:$0xf]
        %v1267 = vld [vmem:[%s1049 + $0x40] sm:$0xf]
        %v1268 = vld [vmem:[%s1049 + $0x44] sm:$0x1]
        %v1269 = vld [vmem:[%s1049 + $0x48] sm:$0xf]
        %v1270 = vld [vmem:[%s1049 + $0x4c] sm:$0xf]
        %v1271 = vld [vmem:[%s1049 + $0x50] sm:$0x1]
        %v1272 = vld [vmem:[%s1049 + $0x54] sm:$0xf]
        %v1273 = vld [vmem:[%s1049 + $0x58] sm:$0xf]
        %v1274 = vld [vmem:[%s1049 + $0x5c] sm:$0x1]
        %v1276 = vshrl.u32 %v1251, 16
        %v1278 = vrot.slane %v1276, 4
        %v1279 = vshll.u32 %v1251, 16
        %v1281 = vrot.slane %v1279, 5
        %v1282 = vor.u32 %v1278, %v1281
        %v1283 = vrot.slane %v1282, 4
        %v1285 = vshll.u32 %v1252, 16
        %v1287 = vrot.slane %v1285, 5
        %v1288 = vsel %vm286, %v1283, %v1287
        %v1289 = vshrl.u32 %v1252, 16
        %v1291 = vrot.slane %v1289, 4
        %v1292 = vor.u32 %v1291, %v1287
        %v1293 = vrot.slane %v1292, 4
        %v1295 = vshll.u32 %v1253, 16
        %v1297 = vrot.slane %v1295, 5
        %v1298 = vsel %vm286, %v1293, %v1297
        %v1300 = vshrl.u32 %v1254, 16
        %v1302 = vrot.slane %v1300, 4
        %v1303 = vshll.u32 %v1254, 16
        %v1305 = vrot.slane %v1303, 5
        %v1306 = vor.u32 %v1302, %v1305
        %v1307 = vrot.slane %v1306, 4
        %v1309 = vshll.u32 %v1255, 16
        %v1311 = vrot.slane %v1309, 5
        %v1312 = vsel %vm286, %v1307, %v1311
        %v1313 = vshrl.u32 %v1255, 16
        %v1315 = vrot.slane %v1313, 4
        %v1316 = vor.u32 %v1315, %v1311
        %v1317 = vrot.slane %v1316, 4
        %v1319 = vshll.u32 %v1256, 16
        %v1321 = vrot.slane %v1319, 5
        %v1322 = vsel %vm286, %v1317, %v1321
        %v1324 = vshrl.u32 %v1257, 16
        %v1326 = vrot.slane %v1324, 4
        %v1327 = vshll.u32 %v1257, 16
        %v1329 = vrot.slane %v1327, 5
        %v1330 = vor.u32 %v1326, %v1329
        %v1331 = vrot.slane %v1330, 4
        %v1333 = vshll.u32 %v1258, 16
        %v1335 = vrot.slane %v1333, 5
        %v1336 = vsel %vm286, %v1331, %v1335
        %v1337 = vshrl.u32 %v1258, 16
        %v1339 = vrot.slane %v1337, 4
        %v1340 = vor.u32 %v1339, %v1335
        %v1341 = vrot.slane %v1340, 4
        %v1343 = vshll.u32 %v1259, 16
        %v1345 = vrot.slane %v1343, 5
        %v1346 = vsel %vm286, %v1341, %v1345
        %v1348 = vshrl.u32 %v1260, 16
        %v1350 = vrot.slane %v1348, 4
        %v1351 = vshll.u32 %v1260, 16
        %v1353 = vrot.slane %v1351, 5
        %v1354 = vor.u32 %v1350, %v1353
        %v1355 = vrot.slane %v1354, 4
        %v1357 = vshll.u32 %v1261, 16
        %v1359 = vrot.slane %v1357, 5
        %v1360 = vsel %vm286, %v1355, %v1359
        %v1361 = vshrl.u32 %v1261, 16
        %v1363 = vrot.slane %v1361, 4
        %v1364 = vor.u32 %v1363, %v1359
        %v1365 = vrot.slane %v1364, 4
        %v1367 = vshll.u32 %v1262, 16
        %v1369 = vrot.slane %v1367, 5
        %v1370 = vsel %vm286, %v1365, %v1369
        %v1372 = vshrl.u32 %v1263, 16
        %v1374 = vrot.slane %v1372, 4
        %v1375 = vshll.u32 %v1263, 16
        %v1377 = vrot.slane %v1375, 5
        %v1378 = vor.u32 %v1374, %v1377
        %v1379 = vrot.slane %v1378, 4
        %v1381 = vshll.u32 %v1264, 16
        %v1383 = vrot.slane %v1381, 5
        %v1384 = vsel %vm286, %v1379, %v1383
        %v1385 = vshrl.u32 %v1264, 16
        %v1387 = vrot.slane %v1385, 4
        %v1388 = vor.u32 %v1387, %v1383
        %v1389 = vrot.slane %v1388, 4
        %v1391 = vshll.u32 %v1265, 16
        %v1393 = vrot.slane %v1391, 5
        %v1394 = vsel %vm286, %v1389, %v1393
        %v1396 = vshrl.u32 %v1266, 16
        %v1398 = vrot.slane %v1396, 4
        %v1399 = vshll.u32 %v1266, 16
        %v1401 = vrot.slane %v1399, 5
        %v1402 = vor.u32 %v1398, %v1401
        %v1403 = vrot.slane %v1402, 4
        %v1405 = vshll.u32 %v1267, 16
        %v1407 = vrot.slane %v1405, 5
        %v1408 = vsel %vm286, %v1403, %v1407
        %v1409 = vshrl.u32 %v1267, 16
        %v1411 = vrot.slane %v1409, 4
        %v1412 = vor.u32 %v1411, %v1407
        %v1413 = vrot.slane %v1412, 4
        %v1415 = vshll.u32 %v1268, 16
        %v1417 = vrot.slane %v1415, 5
        %v1418 = vsel %vm286, %v1413, %v1417
        %v1420 = vshrl.u32 %v1269, 16
        %v1422 = vrot.slane %v1420, 4
        %v1423 = vshll.u32 %v1269, 16
        %v1425 = vrot.slane %v1423, 5
        %v1426 = vor.u32 %v1422, %v1425
        %v1427 = vrot.slane %v1426, 4
        %v1429 = vshll.u32 %v1270, 16
        %v1431 = vrot.slane %v1429, 5
        %v1432 = vsel %vm286, %v1427, %v1431
        %v1433 = vshrl.u32 %v1270, 16
        %v1435 = vrot.slane %v1433, 4
        %v1436 = vor.u32 %v1435, %v1431
        %v1437 = vrot.slane %v1436, 4
        %v1439 = vshll.u32 %v1271, 16
        %v1441 = vrot.slane %v1439, 5
        %v1442 = vsel %vm286, %v1437, %v1441
        %v1444 = vshrl.u32 %v1272, 16
        %v1446 = vrot.slane %v1444, 4
        %v1447 = vshll.u32 %v1272, 16
        %v1449 = vrot.slane %v1447, 5
        %v1450 = vor.u32 %v1446, %v1449
        %v1451 = vrot.slane %v1450, 4
        %v1453 = vshll.u32 %v1273, 16
        %v1455 = vrot.slane %v1453, 5
        %v1456 = vsel %vm286, %v1451, %v1455
        %v1457 = vshrl.u32 %v1273, 16
        %v1459 = vrot.slane %v1457, 4
        %v1460 = vor.u32 %v1459, %v1455
        %v1461 = vrot.slane %v1460, 4
        %v1463 = vshll.u32 %v1274, 16
        %v1465 = vrot.slane %v1463, 5
        %v1466 = vsel %vm286, %v1461, %v1465
        %v1467 = vld [vmem:[#allocation5 + $0x8] sm:$0x3]
        %v1468 = vunpack.c.l.b16 %v1288
        %v1469 = vunpack.c.l.b16 %v1298
        %v1470 = vunpack.c.l.b16 %v1312
        %v1471 = vunpack.c.l.b16 %v1322
        %v1472 = vunpack.c.l.b16 %v1336
        %v1473 = vunpack.c.l.b16 %v1346
        %v1474 = vunpack.c.l.b16 %v1360
        %v1475 = vunpack.c.l.b16 %v1370
        %v1476 = vunpack.c.l.b16 %v1384
        %v1477 = vunpack.c.l.b16 %v1394
        %v1478 = vunpack.c.l.b16 %v1408
        %v1479 = vunpack.c.l.b16 %v1418
        %v1480 = vunpack.c.l.b16 %v1432
        %v1481 = vunpack.c.l.b16 %v1442
        %v1482 = vunpack.c.l.b16 %v1456
        %v1483 = vunpack.c.l.b16 %v1466
        %v1484 = vpack.c.b16 %v1469, %v1468
        %v1485 = vpack.c.b16 %v1471, %v1470
        %v1486 = vpack.c.b16 %v1473, %v1472
        %v1487 = vpack.c.b16 %v1475, %v1474
        %v1488 = vpack.c.b16 %v1477, %v1476
        %v1489 = vpack.c.b16 %v1479, %v1478
        %v1490 = vpack.c.b16 %v1481, %v1480
        %v1491 = vpack.c.b16 %v1483, %v1482
        %v1493 = vsel %vm508, %v1484, 0
        %v1496 = vsel %vm508, %v1485, 0
        %v1499 = vsel %vm508, %v1486, 0
        %v1502 = vsel %vm508, %v1487, 0
        %v1505 = vsel %vm508, %v1488, 0
        %v1508 = vsel %vm508, %v1489, 0
        %v1511 = vsel %vm508, %v1490, 0
        %v1514 = vsel %vm508, %v1491, 0
        %v1517 = vsel %vm533, %v1467, 0
        %1519 = vmatprep.subr.bf16.mxu0 0
        %1520 = vmatpush1.bf16.msra.mxu0 %v1517
        %1521 = vmatprep.subr.bf16.mxu0 0
        %1522 = vmatpush1.bf16.msra.mxu0 0
        %1523 = vmatprep.subr.bf16.mxu0 0
        %1524 = vmatpush1.bf16.msra.mxu0 0
        %1525 = vmatprep.subr.bf16.mxu0 0
        %1526 = vmatpush1.bf16.msra.mxu0 0
        %1527 = vmatprep.subr.bf16.mxu0 0
        %1528 = vmatpush1.bf16.msra.mxu0 0
        %1529 = vmatprep.subr.bf16.mxu0 0
        %1530 = vmatpush1.bf16.msra.mxu0 0
        %1531 = vmatprep.subr.bf16.mxu0 0
        %1532 = vmatpush1.bf16.msra.mxu0 0
        %1533 = vmatprep.subr.bf16.mxu0 0
        %1534 = vmatpush1.bf16.msra.mxu0 0
        %1535 = vmatprep.subr.bf16.mxu0 0
        %1536 = vmatpush1.bf16.msra.mxu0 0
        %1537 = vmatprep.subr.bf16.mxu0 0
        %1538 = vmatpush1.bf16.msra.mxu0 0
        %1539 = vmatprep.subr.bf16.mxu0 0
        %1540 = vmatpush1.bf16.msra.mxu0 0
        %1541 = vmatprep.subr.bf16.mxu0 0
        %1542 = vmatpush1.bf16.msra.mxu0 0
        %1543 = vmatprep.subr.bf16.mxu0 0
        %1544 = vmatpush1.bf16.msra.mxu0 0
        %1545 = vmatprep.subr.bf16.mxu0 0
        %1546 = vmatpush1.bf16.msra.mxu0 0
        %1547 = vmatprep.subr.bf16.mxu0 0
        %1548 = vmatpush1.bf16.msra.mxu0 0
        %1549 = vmatprep.subr.bf16.mxu0 0
        %1550 = vmatpush1.bf16.msra.mxu0 0
        %1551 = vmatprep.mubr.bf16.mxu0 0
        %1552 = vmatmul.mubr.bf16.gmra.mrb[0].mxu0 %v1493
        %v1553 = vpop.f32.mrb[0].mxu0
        %v1554 = vadd.f32 0.0, %v1553
        %v1555 = vpop.f32.mrb[0].mxu0
        %v1556 = vpop.f32.mrb[0].mxu0
        %v1557 = vadd.f32 0.0, %v1556
        %v1558 = vpop.f32.mrb[0].mxu0
        %1559 = vmatprep.mubr.bf16.mxu0 0
        %1560 = vmatmul.mubr.bf16.gmra.mrb[0].mxu0 %v1496
        %v1561 = vpop.f32.mrb[0].mxu0
        %v1562 = vadd.f32 0.0, %v1561
        %v1563 = vpop.f32.mrb[0].mxu0
        %v1564 = vpop.f32.mrb[0].mxu0
        %v1565 = vadd.f32 0.0, %v1564
        %v1566 = vpop.f32.mrb[0].mxu0
        %1567 = vmatprep.mubr.bf16.mxu0 0
        %1568 = vmatmul.mubr.bf16.gmra.mrb[0].mxu0 %v1499
        %v1569 = vpop.f32.mrb[0].mxu0
        %v1570 = vadd.f32 0.0, %v1569
        %v1571 = vpop.f32.mrb[0].mxu0
        %v1572 = vpop.f32.mrb[0].mxu0
        %v1573 = vadd.f32 0.0, %v1572
        %v1574 = vpop.f32.mrb[0].mxu0
        %1575 = vmatprep.mubr.bf16.mxu0 0
        %1576 = vmatmul.mubr.bf16.gmra.mrb[0].mxu0 %v1502
        %v1577 = vpop.f32.mrb[0].mxu0
        %v1578 = vadd.f32 0.0, %v1577
        %v1579 = vpop.f32.mrb[0].mxu0
        %v1580 = vpop.f32.mrb[0].mxu0
        %v1581 = vadd.f32 0.0, %v1580
        %v1582 = vpop.f32.mrb[0].mxu0
        %1583 = vmatprep.mubr.bf16.mxu0 0
        %1584 = vmatmul.mubr.bf16.gmra.mrb[0].mxu0 %v1505
        %v1585 = vpop.f32.mrb[0].mxu0
        %v1586 = vadd.f32 0.0, %v1585
        %v1587 = vpop.f32.mrb[0].mxu0
        %v1588 = vpop.f32.mrb[0].mxu0
        %v1589 = vadd.f32 0.0, %v1588
        %v1590 = vpop.f32.mrb[0].mxu0
        %1591 = vmatprep.mubr.bf16.mxu0 0
        %1592 = vmatmul.mubr.bf16.gmra.mrb[0].mxu0 %v1508
        %v1593 = vpop.f32.mrb[0].mxu0
        %v1594 = vadd.f32 0.0, %v1593
        %v1595 = vpop.f32.mrb[0].mxu0
        %v1596 = vpop.f32.mrb[0].mxu0
        %v1597 = vadd.f32 0.0, %v1596
        %v1598 = vpop.f32.mrb[0].mxu0
        %1599 = vmatprep.mubr.bf16.mxu0 0
        %1600 = vmatmul.mubr.bf16.gmra.mrb[0].mxu0 %v1511
        %v1601 = vpop.f32.mrb[0].mxu0
        %v1602 = vadd.f32 0.0, %v1601
        %v1603 = vpop.f32.mrb[0].mxu0
        %v1604 = vpop.f32.mrb[0].mxu0
        %v1605 = vadd.f32 0.0, %v1604
        %v1606 = vpop.f32.mrb[0].mxu0
        %1607 = vmatprep.mubr.bf16.mxu0 0
        %1608 = vmatmul.mubr.bf16.gmra.mrb[0].mxu0 %v1514
        %v1609 = vpop.f32.mrb[0].mxu0
        %v1610 = vadd.f32 0.0, %v1609
        %v1611 = vpop.f32.mrb[0].mxu0
        %v1612 = vpop.f32.mrb[0].mxu0
        %v1613 = vadd.f32 0.0, %v1612
        %v1614 = vpop.f32.mrb[0].mxu0
        %1615 = vdwg.mxu0
        %v1616 = vadd.f32 %v1235, %v1554
        %v1617 = vadd.f32 %v1236, %v1557
        %v1618 = vadd.f32 %v1237, %v1562
        %v1619 = vadd.f32 %v1238, %v1565
        %v1620 = vadd.f32 %v1239, %v1570
        %v1621 = vadd.f32 %v1240, %v1573
        %v1622 = vadd.f32 %v1241, %v1578
        %v1623 = vadd.f32 %v1242, %v1581
        %v1624 = vadd.f32 %v1243, %v1586
        %v1625 = vadd.f32 %v1244, %v1589
        %v1626 = vadd.f32 %v1245, %v1594
        %v1627 = vadd.f32 %v1246, %v1597
        %v1628 = vadd.f32 %v1247, %v1602
        %v1629 = vadd.f32 %v1248, %v1605
        %v1630 = vadd.f32 %v1249, %v1610
        %v1631 = vadd.f32 %v1250, %v1613
        %v1632 = vld [vmem:[%s1049] sm:$0xe]
        %v1633 = vld [vmem:[%s1049 + $0xc] sm:$0xe]
        %v1634 = vld [vmem:[%s1049 + $0x18] sm:$0xe]
        %v1635 = vld [vmem:[%s1049 + $0x24] sm:$0xe]
        %v1636 = vld [vmem:[%s1049 + $0x30] sm:$0xe]
        %v1637 = vld [vmem:[%s1049 + $0x3c] sm:$0xe]
        %v1638 = vld [vmem:[%s1049 + $0x48] sm:$0xe]
        %v1639 = vld [vmem:[%s1049 + $0x54] sm:$0xe]
        %v1664 = vrot.slane %v1632, 5
        %v1665 = vrot.slane %v1664, 4
        %v1666 = vrot.slane %v1252, 5
        %v1667 = vsel %vm824, %v1665, %v1666
        %v1668 = vrot.slane %v1666, 4
        %v1669 = vrot.slane %v1253, 5
        %v1670 = vsel %vm824, %v1668, %v1669
        %v1671 = vrot.slane %v1633, 5
        %v1672 = vrot.slane %v1671, 4
        %v1673 = vrot.slane %v1255, 5
        %v1674 = vsel %vm824, %v1672, %v1673
        %v1675 = vrot.slane %v1673, 4
        %v1676 = vrot.slane %v1256, 5
        %v1677 = vsel %vm824, %v1675, %v1676
        %v1678 = vrot.slane %v1634, 5
        %v1679 = vrot.slane %v1678, 4
        %v1680 = vrot.slane %v1258, 5
        %v1681 = vsel %vm824, %v1679, %v1680
        %v1682 = vrot.slane %v1680, 4
        %v1683 = vrot.slane %v1259, 5
        %v1684 = vsel %vm824, %v1682, %v1683
        %v1685 = vrot.slane %v1635, 5
        %v1686 = vrot.slane %v1685, 4
        %v1687 = vrot.slane %v1261, 5
        %v1688 = vsel %vm824, %v1686, %v1687
        %v1689 = vrot.slane %v1687, 4
        %v1690 = vrot.slane %v1262, 5
        %v1691 = vsel %vm824, %v1689, %v1690
        %v1692 = vrot.slane %v1636, 5
        %v1693 = vrot.slane %v1692, 4
        %v1694 = vrot.slane %v1264, 5
        %v1695 = vsel %vm824, %v1693, %v1694
        %v1696 = vrot.slane %v1694, 4
        %v1697 = vrot.slane %v1265, 5
        %v1698 = vsel %vm824, %v1696, %v1697
        %v1699 = vrot.slane %v1637, 5
        %v1700 = vrot.slane %v1699, 4
        %v1701 = vrot.slane %v1267, 5
        %v1702 = vsel %vm824, %v1700, %v1701
        %v1703 = vrot.slane %v1701, 4
        %v1704 = vrot.slane %v1268, 5
        %v1705 = vsel %vm824, %v1703, %v1704
        %v1706 = vrot.slane %v1638, 5
        %v1707 = vrot.slane %v1706, 4
        %v1708 = vrot.slane %v1270, 5
        %v1709 = vsel %vm824, %v1707, %v1708
        %v1710 = vrot.slane %v1708, 4
        %v1711 = vrot.slane %v1271, 5
        %v1712 = vsel %vm824, %v1710, %v1711
        %v1713 = vrot.slane %v1639, 5
        %v1714 = vrot.slane %v1713, 4
        %v1715 = vrot.slane %v1273, 5
        %v1716 = vsel %vm824, %v1714, %v1715
        %v1717 = vrot.slane %v1715, 4
        %v1718 = vrot.slane %v1274, 5
        %v1719 = vsel %vm824, %v1717, %v1718
        %v1720 = vld [vmem:[#allocation5 + $0x8] sm:$0xc]
        %v1721 = vunpack.c.l.b16 %v1667
        %v1722 = vunpack.c.l.b16 %v1670
        %v1723 = vunpack.c.l.b16 %v1674
        %v1724 = vunpack.c.l.b16 %v1677
        %v1725 = vunpack.c.l.b16 %v1681
        %v1726 = vunpack.c.l.b16 %v1684
        %v1727 = vunpack.c.l.b16 %v1688
        %v1728 = vunpack.c.l.b16 %v1691
        %v1729 = vunpack.c.l.b16 %v1695
        %v1730 = vunpack.c.l.b16 %v1698
        %v1731 = vunpack.c.l.b16 %v1702
        %v1732 = vunpack.c.l.b16 %v1705
        %v1733 = vunpack.c.l.b16 %v1709
        %v1734 = vunpack.c.l.b16 %v1712
        %v1735 = vunpack.c.l.b16 %v1716
        %v1736 = vunpack.c.l.b16 %v1719
        %v1737 = vpack.c.b16 %v1722, %v1721
        %v1738 = vpack.c.b16 %v1724, %v1723
        %v1739 = vpack.c.b16 %v1726, %v1725
        %v1740 = vpack.c.b16 %v1728, %v1727
        %v1741 = vpack.c.b16 %v1730, %v1729
        %v1742 = vpack.c.b16 %v1732, %v1731
        %v1743 = vpack.c.b16 %v1734, %v1733
        %v1744 = vpack.c.b16 %v1736, %v1735
        %v1746 = vunpack.c.l.b16 %v1720
        %v1747 = vpack.c.b16 %v1746, %v1746
        %v1748 = vrot.slane %v1747, 2
        %v1750 = vsel %vm508, %v1737, 0
        %v1753 = vsel %vm508, %v1738, 0
        %v1756 = vsel %vm508, %v1739, 0
        %v1759 = vsel %vm508, %v1740, 0
        %v1762 = vsel %vm508, %v1741, 0
        %v1765 = vsel %vm508, %v1742, 0
        %v1768 = vsel %vm508, %v1743, 0
        %v1771 = vsel %vm508, %v1744, 0
        %v1774 = vsel %vm533, %v1748, 0
        %1776 = vmatprep.subr.bf16.mxu0 0
        %1777 = vmatpush1.bf16.msra.mxu0 %v1774
        %1778 = vmatprep.subr.bf16.mxu0 0
        %1779 = vmatpush1.bf16.msra.mxu0 0
        %1780 = vmatprep.subr.bf16.mxu0 0
        %1781 = vmatpush1.bf16.msra.mxu0 0
        %1782 = vmatprep.subr.bf16.mxu0 0
        %1783 = vmatpush1.bf16.msra.mxu0 0
        %1784 = vmatprep.subr.bf16.mxu0 0
        %1785 = vmatpush1.bf16.msra.mxu0 0
        %1786 = vmatprep.subr.bf16.mxu0 0
        %1787 = vmatpush1.bf16.msra.mxu0 0
        %1788 = vmatprep.subr.bf16.mxu0 0
        %1789 = vmatpush1.bf16.msra.mxu0 0
        %1790 = vmatprep.subr.bf16.mxu0 0
        %1791 = vmatpush1.bf16.msra.mxu0 0
        %1792 = vmatprep.subr.bf16.mxu0 0
        %1793 = vmatpush1.bf16.msra.mxu0 0
        %1794 = vmatprep.subr.bf16.mxu0 0
        %1795 = vmatpush1.bf16.msra.mxu0 0
        %1796 = vmatprep.subr.bf16.mxu0 0
        %1797 = vmatpush1.bf16.msra.mxu0 0
        %1798 = vmatprep.subr.bf16.mxu0 0
        %1799 = vmatpush1.bf16.msra.mxu0 0
        %1800 = vmatprep.subr.bf16.mxu0 0
        %1801 = vmatpush1.bf16.msra.mxu0 0
        %1802 = vmatprep.subr.bf16.mxu0 0
        %1803 = vmatpush1.bf16.msra.mxu0 0
        %1804 = vmatprep.subr.bf16.mxu0 0
        %1805 = vmatpush1.bf16.msra.mxu0 0
        %1806 = vmatprep.subr.bf16.mxu0 0
        %1807 = vmatpush1.bf16.msra.mxu0 0
        %1808 = vmatprep.mubr.bf16.mxu0 0
        %1809 = vmatmul.mubr.bf16.gmra.mrb[0].mxu0 %v1750
        %v1810 = vpop.f32.mrb[0].mxu0
        %v1811 = vadd.f32 0.0, %v1810
        %v1812 = vpop.f32.mrb[0].mxu0
        %v1813 = vpop.f32.mrb[0].mxu0
        %v1814 = vadd.f32 0.0, %v1813
        %v1815 = vpop.f32.mrb[0].mxu0
        %1816 = vmatprep.mubr.bf16.mxu0 0
        %1817 = vmatmul.mubr.bf16.gmra.mrb[0].mxu0 %v1753
        %v1818 = vpop.f32.mrb[0].mxu0
        %v1819 = vadd.f32 0.0, %v1818
        %v1820 = vpop.f32.mrb[0].mxu0
        %v1821 = vpop.f32.mrb[0].mxu0
        %v1822 = vadd.f32 0.0, %v1821
        %v1823 = vpop.f32.mrb[0].mxu0
        %1824 = vmatprep.mubr.bf16.mxu0 0
        %1825 = vmatmul.mubr.bf16.gmra.mrb[0].mxu0 %v1756
        %v1826 = vpop.f32.mrb[0].mxu0
        %v1827 = vadd.f32 0.0, %v1826
        %v1828 = vpop.f32.mrb[0].mxu0
        %v1829 = vpop.f32.mrb[0].mxu0
        %v1830 = vadd.f32 0.0, %v1829
        %v1831 = vpop.f32.mrb[0].mxu0
        %1832 = vmatprep.mubr.bf16.mxu0 0
        %1833 = vmatmul.mubr.bf16.gmra.mrb[0].mxu0 %v1759
        %v1834 = vpop.f32.mrb[0].mxu0
        %v1835 = vadd.f32 0.0, %v1834
        %v1836 = vpop.f32.mrb[0].mxu0
        %v1837 = vpop.f32.mrb[0].mxu0
        %v1838 = vadd.f32 0.0, %v1837
        %v1839 = vpop.f32.mrb[0].mxu0
        %1840 = vmatprep.mubr.bf16.mxu0 0
        %1841 = vmatmul.mubr.bf16.gmra.mrb[0].mxu0 %v1762
        %v1842 = vpop.f32.mrb[0].mxu0
        %v1843 = vadd.f32 0.0, %v1842
        %v1844 = vpop.f32.mrb[0].mxu0
        %v1845 = vpop.f32.mrb[0].mxu0
        %v1846 = vadd.f32 0.0, %v1845
        %v1847 = vpop.f32.mrb[0].mxu0
        %1848 = vmatprep.mubr.bf16.mxu0 0
        %1849 = vmatmul.mubr.bf16.gmra.mrb[0].mxu0 %v1765
        %v1850 = vpop.f32.mrb[0].mxu0
        %v1851 = vadd.f32 0.0, %v1850
        %v1852 = vpop.f32.mrb[0].mxu0
        %v1853 = vpop.f32.mrb[0].mxu0
        %v1854 = vadd.f32 0.0, %v1853
        %v1855 = vpop.f32.mrb[0].mxu0
        %1856 = vmatprep.mubr.bf16.mxu0 0
        %1857 = vmatmul.mubr.bf16.gmra.mrb[0].mxu0 %v1768
        %v1858 = vpop.f32.mrb[0].mxu0
        %v1859 = vadd.f32 0.0, %v1858
        %v1860 = vpop.f32.mrb[0].mxu0
        %v1861 = vpop.f32.mrb[0].mxu0
        %v1862 = vadd.f32 0.0, %v1861
        %v1863 = vpop.f32.mrb[0].mxu0
        %1864 = vmatprep.mubr.bf16.mxu0 0
        %1865 = vmatmul.mubr.bf16.gmra.mrb[0].mxu0 %v1771
        %v1866 = vpop.f32.mrb[0].mxu0
        %v1867 = vadd.f32 0.0, %v1866
        %v1868 = vpop.f32.mrb[0].mxu0
        %v1869 = vpop.f32.mrb[0].mxu0
        %v1870 = vadd.f32 0.0, %v1869
        %v1871 = vpop.f32.mrb[0].mxu0
        %1872 = vdwg.mxu0
        %v1873 = vadd.f32 %v1616, %v1811
        %v1874 = vadd.f32 %v1617, %v1814
        %v1875 = vadd.f32 %v1618, %v1819
        %v1876 = vadd.f32 %v1619, %v1822
        %v1877 = vadd.f32 %v1620, %v1827
        %v1878 = vadd.f32 %v1621, %v1830
        %v1879 = vadd.f32 %v1622, %v1835
        %v1880 = vadd.f32 %v1623, %v1838
        %v1881 = vadd.f32 %v1624, %v1843
        %v1882 = vadd.f32 %v1625, %v1846
        %v1883 = vadd.f32 %v1626, %v1851
        %v1884 = vadd.f32 %v1627, %v1854
        %v1885 = vadd.f32 %v1628, %v1859
        %v1886 = vadd.f32 %v1629, %v1862
        %v1887 = vadd.f32 %v1630, %v1867
        %v1888 = vadd.f32 %v1631, %v1870
        %s1889 = sadd.s32 %s255, 2
        %s1890 = smul.u32 %s1889, 3
        %s1891 = smul.addr %s1890, 4
        %s1892 = scalar_lea.vmem %s222, %s1891 [#allocation2]
        %v1893 = vld [vmem:[%s1892] sm:$0xf]
        %v1894 = vld [vmem:[%s1892 + $0x4] sm:$0xf]
        %v1895 = vld [vmem:[%s1892 + $0xc] sm:$0xf]
        %v1896 = vld [vmem:[%s1892 + $0x10] sm:$0xf]
        %v1897 = vld [vmem:[%s1892 + $0x18] sm:$0xf]
        %v1898 = vld [vmem:[%s1892 + $0x1c] sm:$0xf]
        %v1899 = vld [vmem:[%s1892 + $0x24] sm:$0xf]
        %v1900 = vld [vmem:[%s1892 + $0x28] sm:$0xf]
        %v1901 = vld [vmem:[%s1892 + $0x30] sm:$0xf]
        %v1902 = vld [vmem:[%s1892 + $0x34] sm:$0xf]
        %v1903 = vld [vmem:[%s1892 + $0x3c] sm:$0xf]
        %v1904 = vld [vmem:[%s1892 + $0x40] sm:$0xf]
        %v1905 = vld [vmem:[%s1892 + $0x48] sm:$0xf]
        %v1906 = vld [vmem:[%s1892 + $0x4c] sm:$0xf]
        %v1907 = vld [vmem:[%s1892 + $0x54] sm:$0xf]
        %v1908 = vld [vmem:[%s1892 + $0x58] sm:$0xf]
        %v1909 = vld [vmem:[#allocation5 + $0xc] sm:$0x3]
        %v1926 = vunpack.c.l.b16 %v1893
        %v1927 = vunpack.c.l.b16 %v1894
        %v1928 = vunpack.c.l.b16 %v1895
        %v1929 = vunpack.c.l.b16 %v1896
        %v1930 = vunpack.c.l.b16 %v1897
        %v1931 = vunpack.c.l.b16 %v1898
        %v1932 = vunpack.c.l.b16 %v1899
        %v1933 = vunpack.c.l.b16 %v1900
        %v1934 = vunpack.c.l.b16 %v1901
        %v1935 = vunpack.c.l.b16 %v1902
        %v1936 = vunpack.c.l.b16 %v1903
        %v1937 = vunpack.c.l.b16 %v1904
        %v1938 = vunpack.c.l.b16 %v1905
        %v1939 = vunpack.c.l.b16 %v1906
        %v1940 = vunpack.c.l.b16 %v1907
        %v1941 = vunpack.c.l.b16 %v1908
        %v1942 = vpack.c.b16 %v1927, %v1926
        %v1943 = vpack.c.b16 %v1929, %v1928
        %v1944 = vpack.c.b16 %v1931, %v1930
        %v1945 = vpack.c.b16 %v1933, %v1932
        %v1946 = vpack.c.b16 %v1935, %v1934
        %v1947 = vpack.c.b16 %v1937, %v1936
        %v1948 = vpack.c.b16 %v1939, %v1938
        %v1949 = vpack.c.b16 %v1941, %v1940
        %v1951 = vsel %vm508, %v1942, 0
        %v1954 = vsel %vm508, %v1943, 0
        %v1957 = vsel %vm508, %v1944, 0
        %v1960 = vsel %vm508, %v1945, 0
        %v1963 = vsel %vm508, %v1946, 0
        %v1966 = vsel %vm508, %v1947, 0
        %v1969 = vsel %vm508, %v1948, 0
        %v1972 = vsel %vm508, %v1949, 0
        %v1975 = vsel %vm533, %v1909, 0
        %1977 = vmatprep.subr.bf16.mxu0 0
        %1978 = vmatpush1.bf16.msra.mxu0 %v1975
        %1979 = vmatprep.subr.bf16.mxu0 0
        %1980 = vmatpush1.bf16.msra.mxu0 0
        %1981 = vmatprep.subr.bf16.mxu0 0
        %1982 = vmatpush1.bf16.msra.mxu0 0
        %1983 = vmatprep.subr.bf16.mxu0 0
        %1984 = vmatpush1.bf16.msra.mxu0 0
        %1985 = vmatprep.subr.bf16.mxu0 0
        %1986 = vmatpush1.bf16.msra.mxu0 0
        %1987 = vmatprep.subr.bf16.mxu0 0
        %1988 = vmatpush1.bf16.msra.mxu0 0
        %1989 = vmatprep.subr.bf16.mxu0 0
        %1990 = vmatpush1.bf16.msra.mxu0 0
        %1991 = vmatprep.subr.bf16.mxu0 0
        %1992 = vmatpush1.bf16.msra.mxu0 0
        %1993 = vmatprep.subr.bf16.mxu0 0
        %1994 = vmatpush1.bf16.msra.mxu0 0
        %1995 = vmatprep.subr.bf16.mxu0 0
        %1996 = vmatpush1.bf16.msra.mxu0 0
        %1997 = vmatprep.subr.bf16.mxu0 0
        %1998 = vmatpush1.bf16.msra.mxu0 0
        %1999 = vmatprep.subr.bf16.mxu0 0
        %2000 = vmatpush1.bf16.msra.mxu0 0
        %2001 = vmatprep.subr.bf16.mxu0 0
        %2002 = vmatpush1.bf16.msra.mxu0 0
        %2003 = vmatprep.subr.bf16.mxu0 0
        %2004 = vmatpush1.bf16.msra.mxu0 0
        %2005 = vmatprep.subr.bf16.mxu0 0
        %2006 = vmatpush1.bf16.msra.mxu0 0
        %2007 = vmatprep.subr.bf16.mxu0 0
        %2008 = vmatpush1.bf16.msra.mxu0 0
        %2009 = vmatprep.mubr.bf16.mxu0 0
        %2010 = vmatmul.mubr.bf16.gmra.mrb[0].mxu0 %v1951
        %v2011 = vpop.f32.mrb[0].mxu0
        %v2012 = vadd.f32 0.0, %v2011
        %v2013 = vpop.f32.mrb[0].mxu0
        %v2014 = vpop.f32.mrb[0].mxu0
        %v2015 = vadd.f32 0.0, %v2014
        %v2016 = vpop.f32.mrb[0].mxu0
        %2017 = vmatprep.mubr.bf16.mxu0 0
        %2018 = vmatmul.mubr.bf16.gmra.mrb[0].mxu0 %v1954
        %v2019 = vpop.f32.mrb[0].mxu0
        %v2020 = vadd.f32 0.0, %v2019
        %v2021 = vpop.f32.mrb[0].mxu0
        %v2022 = vpop.f32.mrb[0].mxu0
        %v2023 = vadd.f32 0.0, %v2022
        %v2024 = vpop.f32.mrb[0].mxu0
        %2025 = vmatprep.mubr.bf16.mxu0 0
        %2026 = vmatmul.mubr.bf16.gmra.mrb[0].mxu0 %v1957
        %v2027 = vpop.f32.mrb[0].mxu0
        %v2028 = vadd.f32 0.0, %v2027
        %v2029 = vpop.f32.mrb[0].mxu0
        %v2030 = vpop.f32.mrb[0].mxu0
        %v2031 = vadd.f32 0.0, %v2030
        %v2032 = vpop.f32.mrb[0].mxu0
        %2033 = vmatprep.mubr.bf16.mxu0 0
        %2034 = vmatmul.mubr.bf16.gmra.mrb[0].mxu0 %v1960
        %v2035 = vpop.f32.mrb[0].mxu0
        %v2036 = vadd.f32 0.0, %v2035
        %v2037 = vpop.f32.mrb[0].mxu0
        %v2038 = vpop.f32.mrb[0].mxu0
        %v2039 = vadd.f32 0.0, %v2038
        %v2040 = vpop.f32.mrb[0].mxu0
        %2041 = vmatprep.mubr.bf16.mxu0 0
        %2042 = vmatmul.mubr.bf16.gmra.mrb[0].mxu0 %v1963
        %v2043 = vpop.f32.mrb[0].mxu0
        %v2044 = vadd.f32 0.0, %v2043
        %v2045 = vpop.f32.mrb[0].mxu0
        %v2046 = vpop.f32.mrb[0].mxu0
        %v2047 = vadd.f32 0.0, %v2046
        %v2048 = vpop.f32.mrb[0].mxu0
        %2049 = vmatprep.mubr.bf16.mxu0 0
        %2050 = vmatmul.mubr.bf16.gmra.mrb[0].mxu0 %v1966
        %v2051 = vpop.f32.mrb[0].mxu0
        %v2052 = vadd.f32 0.0, %v2051
        %v2053 = vpop.f32.mrb[0].mxu0
        %v2054 = vpop.f32.mrb[0].mxu0
        %v2055 = vadd.f32 0.0, %v2054
        %v2056 = vpop.f32.mrb[0].mxu0
        %2057 = vmatprep.mubr.bf16.mxu0 0
        %2058 = vmatmul.mubr.bf16.gmra.mrb[0].mxu0 %v1969
        %v2059 = vpop.f32.mrb[0].mxu0
        %v2060 = vadd.f32 0.0, %v2059
        %v2061 = vpop.f32.mrb[0].mxu0
        %v2062 = vpop.f32.mrb[0].mxu0
        %v2063 = vadd.f32 0.0, %v2062
        %v2064 = vpop.f32.mrb[0].mxu0
        %2065 = vmatprep.mubr.bf16.mxu0 0
        %2066 = vmatmul.mubr.bf16.gmra.mrb[0].mxu0 %v1972
        %v2067 = vpop.f32.mrb[0].mxu0
        %v2068 = vadd.f32 0.0, %v2067
        %v2069 = vpop.f32.mrb[0].mxu0
        %v2070 = vpop.f32.mrb[0].mxu0
        %v2071 = vadd.f32 0.0, %v2070
        %v2072 = vpop.f32.mrb[0].mxu0
        %2073 = vdwg.mxu0
        %v2074 = vadd.f32 %v1873, %v2012
        %v2075 = vadd.f32 %v1874, %v2015
        %v2076 = vadd.f32 %v1875, %v2020
        %v2077 = vadd.f32 %v1876, %v2023
        %v2078 = vadd.f32 %v1877, %v2028
        %v2079 = vadd.f32 %v1878, %v2031
        %v2080 = vadd.f32 %v1879, %v2036
        %v2081 = vadd.f32 %v1880, %v2039
        %v2082 = vadd.f32 %v1881, %v2044
        %v2083 = vadd.f32 %v1882, %v2047
        %v2084 = vadd.f32 %v1883, %v2052
        %v2085 = vadd.f32 %v1884, %v2055
        %v2086 = vadd.f32 %v1885, %v2060
        %v2087 = vadd.f32 %v1886, %v2063
        %v2088 = vadd.f32 %v1887, %v2068
        %v2089 = vadd.f32 %v1888, %v2071
        %v2090 = vld [vmem:[%s1892] sm:$0xf]
        %v2091 = vld [vmem:[%s1892 + $0x4] sm:$0xf]
        %v2092 = vld [vmem:[%s1892 + $0x8] sm:$0x1]
        %v2093 = vld [vmem:[%s1892 + $0xc] sm:$0xf]
        %v2094 = vld [vmem:[%s1892 + $0x10] sm:$0xf]
        %v2095 = vld [vmem:[%s1892 + $0x14] sm:$0x1]
        %v2096 = vld [vmem:[%s1892 + $0x18] sm:$0xf]
        %v2097 = vld [vmem:[%s1892 + $0x1c] sm:$0xf]
        %v2098 = vld [vmem:[%s1892 + $0x20] sm:$0x1]
        %v2099 = vld [vmem:[%s1892 + $0x24] sm:$0xf]
        %v2100 = vld [vmem:[%s1892 + $0x28] sm:$0xf]
        %v2101 = vld [vmem:[%s1892 + $0x2c] sm:$0x1]
        %v2102 = vld [vmem:[%s1892 + $0x30] sm:$0xf]
        %v2103 = vld [vmem:[%s1892 + $0x34] sm:$0xf]
        %v2104 = vld [vmem:[%s1892 + $0x38] sm:$0x1]
        %v2105 = vld [vmem:[%s1892 + $0x3c] sm:$0xf]
        %v2106 = vld [vmem:[%s1892 + $0x40] sm:$0xf]
        %v2107 = vld [vmem:[%s1892 + $0x44] sm:$0x1]
        %v2108 = vld [vmem:[%s1892 + $0x48] sm:$0xf]
        %v2109 = vld [vmem:[%s1892 + $0x4c] sm:$0xf]
        %v2110 = vld [vmem:[%s1892 + $0x50] sm:$0x1]
        %v2111 = vld [vmem:[%s1892 + $0x54] sm:$0xf]
        %v2112 = vld [vmem:[%s1892 + $0x58] sm:$0xf]
        %v2113 = vld [vmem:[%s1892 + $0x5c] sm:$0x1]
        %v2115 = vshrl.u32 %v2090, 16
        %v2117 = vrot.slane %v2115, 4
        %v2118 = vshll.u32 %v2090, 16
        %v2120 = vrot.slane %v2118, 5
        %v2121 = vor.u32 %v2117, %v2120
        %v2122 = vrot.slane %v2121, 4
        %v2124 = vshll.u32 %v2091, 16
        %v2126 = vrot.slane %v2124, 5
        %v2127 = vsel %vm286, %v2122, %v2126
        %v2128 = vshrl.u32 %v2091, 16
        %v2130 = vrot.slane %v2128, 4
        %v2131 = vor.u32 %v2130, %v2126
        %v2132 = vrot.slane %v2131, 4
        %v2134 = vshll.u32 %v2092, 16
        %v2136 = vrot.slane %v2134, 5
        %v2137 = vsel %vm286, %v2132, %v2136
        %v2139 = vshrl.u32 %v2093, 16
        %v2141 = vrot.slane %v2139, 4
        %v2142 = vshll.u32 %v2093, 16
        %v2144 = vrot.slane %v2142, 5
        %v2145 = vor.u32 %v2141, %v2144
        %v2146 = vrot.slane %v2145, 4
        %v2148 = vshll.u32 %v2094, 16
        %v2150 = vrot.slane %v2148, 5
        %v2151 = vsel %vm286, %v2146, %v2150
        %v2152 = vshrl.u32 %v2094, 16
        %v2154 = vrot.slane %v2152, 4
        %v2155 = vor.u32 %v2154, %v2150
        %v2156 = vrot.slane %v2155, 4
        %v2158 = vshll.u32 %v2095, 16
        %v2160 = vrot.slane %v2158, 5
        %v2161 = vsel %vm286, %v2156, %v2160
        %v2163 = vshrl.u32 %v2096, 16
        %v2165 = vrot.slane %v2163, 4
        %v2166 = vshll.u32 %v2096, 16
        %v2168 = vrot.slane %v2166, 5
        %v2169 = vor.u32 %v2165, %v2168
        %v2170 = vrot.slane %v2169, 4
        %v2172 = vshll.u32 %v2097, 16
        %v2174 = vrot.slane %v2172, 5
        %v2175 = vsel %vm286, %v2170, %v2174
        %v2176 = vshrl.u32 %v2097, 16
        %v2178 = vrot.slane %v2176, 4
        %v2179 = vor.u32 %v2178, %v2174
        %v2180 = vrot.slane %v2179, 4
        %v2182 = vshll.u32 %v2098, 16
        %v2184 = vrot.slane %v2182, 5
        %v2185 = vsel %vm286, %v2180, %v2184
        %v2187 = vshrl.u32 %v2099, 16
        %v2189 = vrot.slane %v2187, 4
        %v2190 = vshll.u32 %v2099, 16
        %v2192 = vrot.slane %v2190, 5
        %v2193 = vor.u32 %v2189, %v2192
        %v2194 = vrot.slane %v2193, 4
        %v2196 = vshll.u32 %v2100, 16
        %v2198 = vrot.slane %v2196, 5
        %v2199 = vsel %vm286, %v2194, %v2198
        %v2200 = vshrl.u32 %v2100, 16
        %v2202 = vrot.slane %v2200, 4
        %v2203 = vor.u32 %v2202, %v2198
        %v2204 = vrot.slane %v2203, 4
        %v2206 = vshll.u32 %v2101, 16
        %v2208 = vrot.slane %v2206, 5
        %v2209 = vsel %vm286, %v2204, %v2208
        %v2211 = vshrl.u32 %v2102, 16
        %v2213 = vrot.slane %v2211, 4
        %v2214 = vshll.u32 %v2102, 16
        %v2216 = vrot.slane %v2214, 5
        %v2217 = vor.u32 %v2213, %v2216
        %v2218 = vrot.slane %v2217, 4
        %v2220 = vshll.u32 %v2103, 16
        %v2222 = vrot.slane %v2220, 5
        %v2223 = vsel %vm286, %v2218, %v2222
        %v2224 = vshrl.u32 %v2103, 16
        %v2226 = vrot.slane %v2224, 4
        %v2227 = vor.u32 %v2226, %v2222
        %v2228 = vrot.slane %v2227, 4
        %v2230 = vshll.u32 %v2104, 16
        %v2232 = vrot.slane %v2230, 5
        %v2233 = vsel %vm286, %v2228, %v2232
        %v2235 = vshrl.u32 %v2105, 16
        %v2237 = vrot.slane %v2235, 4
        %v2238 = vshll.u32 %v2105, 16
        %v2240 = vrot.slane %v2238, 5
        %v2241 = vor.u32 %v2237, %v2240
        %v2242 = vrot.slane %v2241, 4
        %v2244 = vshll.u32 %v2106, 16
        %v2246 = vrot.slane %v2244, 5
        %v2247 = vsel %vm286, %v2242, %v2246
        %v2248 = vshrl.u32 %v2106, 16
        %v2250 = vrot.slane %v2248, 4
        %v2251 = vor.u32 %v2250, %v2246
        %v2252 = vrot.slane %v2251, 4
        %v2254 = vshll.u32 %v2107, 16
        %v2256 = vrot.slane %v2254, 5
        %v2257 = vsel %vm286, %v2252, %v2256
        %v2259 = vshrl.u32 %v2108, 16
        %v2261 = vrot.slane %v2259, 4
        %v2262 = vshll.u32 %v2108, 16
        %v2264 = vrot.slane %v2262, 5
        %v2265 = vor.u32 %v2261, %v2264
        %v2266 = vrot.slane %v2265, 4
        %v2268 = vshll.u32 %v2109, 16
        %v2270 = vrot.slane %v2268, 5
        %v2271 = vsel %vm286, %v2266, %v2270
        %v2272 = vshrl.u32 %v2109, 16
        %v2274 = vrot.slane %v2272, 4
        %v2275 = vor.u32 %v2274, %v2270
        %v2276 = vrot.slane %v2275, 4
        %v2278 = vshll.u32 %v2110, 16
        %v2280 = vrot.slane %v2278, 5
        %v2281 = vsel %vm286, %v2276, %v2280
        %v2283 = vshrl.u32 %v2111, 16
        %v2285 = vrot.slane %v2283, 4
        %v2286 = vshll.u32 %v2111, 16
        %v2288 = vrot.slane %v2286, 5
        %v2289 = vor.u32 %v2285, %v2288
        %v2290 = vrot.slane %v2289, 4
        %v2292 = vshll.u32 %v2112, 16
        %v2294 = vrot.slane %v2292, 5
        %v2295 = vsel %vm286, %v2290, %v2294
        %v2296 = vshrl.u32 %v2112, 16
        %v2298 = vrot.slane %v2296, 4
        %v2299 = vor.u32 %v2298, %v2294
        %v2300 = vrot.slane %v2299, 4
        %v2302 = vshll.u32 %v2113, 16
        %v2304 = vrot.slane %v2302, 5
        %v2305 = vsel %vm286, %v2300, %v2304
        %v2306 = vld [vmem:[#allocation5 + $0xc] sm:$0xc]
        %v2307 = vunpack.c.l.b16 %v2127
        %v2308 = vunpack.c.l.b16 %v2137
        %v2309 = vunpack.c.l.b16 %v2151
        %v2310 = vunpack.c.l.b16 %v2161
        %v2311 = vunpack.c.l.b16 %v2175
        %v2312 = vunpack.c.l.b16 %v2185
        %v2313 = vunpack.c.l.b16 %v2199
        %v2314 = vunpack.c.l.b16 %v2209
        %v2315 = vunpack.c.l.b16 %v2223
        %v2316 = vunpack.c.l.b16 %v2233
        %v2317 = vunpack.c.l.b16 %v2247
        %v2318 = vunpack.c.l.b16 %v2257
        %v2319 = vunpack.c.l.b16 %v2271
        %v2320 = vunpack.c.l.b16 %v2281
        %v2321 = vunpack.c.l.b16 %v2295
        %v2322 = vunpack.c.l.b16 %v2305
        %v2323 = vpack.c.b16 %v2308, %v2307
        %v2324 = vpack.c.b16 %v2310, %v2309
        %v2325 = vpack.c.b16 %v2312, %v2311
        %v2326 = vpack.c.b16 %v2314, %v2313
        %v2327 = vpack.c.b16 %v2316, %v2315
        %v2328 = vpack.c.b16 %v2318, %v2317
        %v2329 = vpack.c.b16 %v2320, %v2319
        %v2330 = vpack.c.b16 %v2322, %v2321
        %v2332 = vunpack.c.l.b16 %v2306
        %v2333 = vpack.c.b16 %v2332, %v2332
        %v2334 = vrot.slane %v2333, 2
        %v2336 = vsel %vm508, %v2323, 0
        %v2339 = vsel %vm508, %v2324, 0
        %v2342 = vsel %vm508, %v2325, 0
        %v2345 = vsel %vm508, %v2326, 0
        %v2348 = vsel %vm508, %v2327, 0
        %v2351 = vsel %vm508, %v2328, 0
        %v2354 = vsel %vm508, %v2329, 0
        %v2357 = vsel %vm508, %v2330, 0
        %v2360 = vsel %vm533, %v2334, 0
        %2362 = vmatprep.subr.bf16.mxu0 0
        %2363 = vmatpush1.bf16.msra.mxu0 %v2360
        %2364 = vmatprep.subr.bf16.mxu0 0
        %2365 = vmatpush1.bf16.msra.mxu0 0
        %2366 = vmatprep.subr.bf16.mxu0 0
        %2367 = vmatpush1.bf16.msra.mxu0 0
        %2368 = vmatprep.subr.bf16.mxu0 0
        %2369 = vmatpush1.bf16.msra.mxu0 0
        %2370 = vmatprep.subr.bf16.mxu0 0
        %2371 = vmatpush1.bf16.msra.mxu0 0
        %2372 = vmatprep.subr.bf16.mxu0 0
        %2373 = vmatpush1.bf16.msra.mxu0 0
        %2374 = vmatprep.subr.bf16.mxu0 0
        %2375 = vmatpush1.bf16.msra.mxu0 0
        %2376 = vmatprep.subr.bf16.mxu0 0
        %2377 = vmatpush1.bf16.msra.mxu0 0
        %2378 = vmatprep.subr.bf16.mxu0 0
        %2379 = vmatpush1.bf16.msra.mxu0 0
        %2380 = vmatprep.subr.bf16.mxu0 0
        %2381 = vmatpush1.bf16.msra.mxu0 0
        %2382 = vmatprep.subr.bf16.mxu0 0
        %2383 = vmatpush1.bf16.msra.mxu0 0
        %2384 = vmatprep.subr.bf16.mxu0 0
        %2385 = vmatpush1.bf16.msra.mxu0 0
        %2386 = vmatprep.subr.bf16.mxu0 0
        %2387 = vmatpush1.bf16.msra.mxu0 0
        %2388 = vmatprep.subr.bf16.mxu0 0
        %2389 = vmatpush1.bf16.msra.mxu0 0
        %2390 = vmatprep.subr.bf16.mxu0 0
        %2391 = vmatpush1.bf16.msra.mxu0 0
        %2392 = vmatprep.subr.bf16.mxu0 0
        %2393 = vmatpush1.bf16.msra.mxu0 0
        %2394 = vmatprep.mubr.bf16.mxu0 0
        %2395 = vmatmul.mubr.bf16.gmra.mrb[0].mxu0 %v2336
        %v2396 = vpop.f32.mrb[0].mxu0
        %v2397 = vadd.f32 0.0, %v2396
        %v2398 = vpop.f32.mrb[0].mxu0
        %v2399 = vpop.f32.mrb[0].mxu0
        %v2400 = vadd.f32 0.0, %v2399
        %v2401 = vpop.f32.mrb[0].mxu0
        %2402 = vmatprep.mubr.bf16.mxu0 0
        %2403 = vmatmul.mubr.bf16.gmra.mrb[0].mxu0 %v2339
        %v2404 = vpop.f32.mrb[0].mxu0
        %v2405 = vadd.f32 0.0, %v2404
        %v2406 = vpop.f32.mrb[0].mxu0
        %v2407 = vpop.f32.mrb[0].mxu0
        %v2408 = vadd.f32 0.0, %v2407
        %v2409 = vpop.f32.mrb[0].mxu0
        %2410 = vmatprep.mubr.bf16.mxu0 0
        %2411 = vmatmul.mubr.bf16.gmra.mrb[0].mxu0 %v2342
        %v2412 = vpop.f32.mrb[0].mxu0
        %v2413 = vadd.f32 0.0, %v2412
        %v2414 = vpop.f32.mrb[0].mxu0
        %v2415 = vpop.f32.mrb[0].mxu0
        %v2416 = vadd.f32 0.0, %v2415
        %v2417 = vpop.f32.mrb[0].mxu0
        %2418 = vmatprep.mubr.bf16.mxu0 0
        %2419 = vmatmul.mubr.bf16.gmra.mrb[0].mxu0 %v2345
        %v2420 = vpop.f32.mrb[0].mxu0
        %v2421 = vadd.f32 0.0, %v2420
        %v2422 = vpop.f32.mrb[0].mxu0
        %v2423 = vpop.f32.mrb[0].mxu0
        %v2424 = vadd.f32 0.0, %v2423
        %v2425 = vpop.f32.mrb[0].mxu0
        %2426 = vmatprep.mubr.bf16.mxu0 0
        %2427 = vmatmul.mubr.bf16.gmra.mrb[0].mxu0 %v2348
        %v2428 = vpop.f32.mrb[0].mxu0
        %v2429 = vadd.f32 0.0, %v2428
        %v2430 = vpop.f32.mrb[0].mxu0
        %v2431 = vpop.f32.mrb[0].mxu0
        %v2432 = vadd.f32 0.0, %v2431
        %v2433 = vpop.f32.mrb[0].mxu0
        %2434 = vmatprep.mubr.bf16.mxu0 0
        %2435 = vmatmul.mubr.bf16.gmra.mrb[0].mxu0 %v2351
        %v2436 = vpop.f32.mrb[0].mxu0
        %v2437 = vadd.f32 0.0, %v2436
        %v2438 = vpop.f32.mrb[0].mxu0
        %v2439 = vpop.f32.mrb[0].mxu0
        %v2440 = vadd.f32 0.0, %v2439
        %v2441 = vpop.f32.mrb[0].mxu0
        %2442 = vmatprep.mubr.bf16.mxu0 0
        %2443 = vmatmul.mubr.bf16.gmra.mrb[0].mxu0 %v2354
        %v2444 = vpop.f32.mrb[0].mxu0
        %v2445 = vadd.f32 0.0, %v2444
        %v2446 = vpop.f32.mrb[0].mxu0
        %v2447 = vpop.f32.mrb[0].mxu0
        %v2448 = vadd.f32 0.0, %v2447
        %v2449 = vpop.f32.mrb[0].mxu0
        %2450 = vmatprep.mubr.bf16.mxu0 0
        %2451 = vmatmul.mubr.bf16.gmra.mrb[0].mxu0 %v2357
        %v2452 = vpop.f32.mrb[0].mxu0
        %v2453 = vadd.f32 0.0, %v2452
        %v2454 = vpop.f32.mrb[0].mxu0
        %v2455 = vpop.f32.mrb[0].mxu0
        %v2456 = vadd.f32 0.0, %v2455
        %v2457 = vpop.f32.mrb[0].mxu0
        %2458 = vdwg.mxu0
        %v2459 = vadd.f32 %v2074, %v2397
        %v2460 = vadd.f32 %v2075, %v2400
        %v2461 = vadd.f32 %v2076, %v2405
        %v2462 = vadd.f32 %v2077, %v2408
        %v2463 = vadd.f32 %v2078, %v2413
        %v2464 = vadd.f32 %v2079, %v2416
        %v2465 = vadd.f32 %v2080, %v2421
        %v2466 = vadd.f32 %v2081, %v2424
        %v2467 = vadd.f32 %v2082, %v2429
        %v2468 = vadd.f32 %v2083, %v2432
        %v2469 = vadd.f32 %v2084, %v2437
        %v2470 = vadd.f32 %v2085, %v2440
        %v2471 = vadd.f32 %v2086, %v2445
        %v2472 = vadd.f32 %v2087, %v2448
        %v2473 = vadd.f32 %v2088, %v2453
        %v2474 = vadd.f32 %v2089, %v2456
        %v2475 = vld [vmem:[%s1892] sm:$0xe]
        %v2476 = vld [vmem:[%s1892 + $0xc] sm:$0xe]
        %v2477 = vld [vmem:[%s1892 + $0x18] sm:$0xe]
        %v2478 = vld [vmem:[%s1892 + $0x24] sm:$0xe]
        %v2479 = vld [vmem:[%s1892 + $0x30] sm:$0xe]
        %v2480 = vld [vmem:[%s1892 + $0x3c] sm:$0xe]
        %v2481 = vld [vmem:[%s1892 + $0x48] sm:$0xe]
        %v2482 = vld [vmem:[%s1892 + $0x54] sm:$0xe]
        %v2507 = vrot.slane %v2475, 5
        %v2508 = vrot.slane %v2507, 4
        %v2509 = vrot.slane %v2091, 5
        %v2510 = vsel %vm824, %v2508, %v2509
        %v2511 = vrot.slane %v2509, 4
        %v2512 = vrot.slane %v2092, 5
        %v2513 = vsel %vm824, %v2511, %v2512
        %v2514 = vrot.slane %v2476, 5
        %v2515 = vrot.slane %v2514, 4
        %v2516 = vrot.slane %v2094, 5
        %v2517 = vsel %vm824, %v2515, %v2516
        %v2518 = vrot.slane %v2516, 4
        %v2519 = vrot.slane %v2095, 5
        %v2520 = vsel %vm824, %v2518, %v2519
        %v2521 = vrot.slane %v2477, 5
        %v2522 = vrot.slane %v2521, 4
        %v2523 = vrot.slane %v2097, 5
        %v2524 = vsel %vm824, %v2522, %v2523
        %v2525 = vrot.slane %v2523, 4
        %v2526 = vrot.slane %v2098, 5
        %v2527 = vsel %vm824, %v2525, %v2526
        %v2528 = vrot.slane %v2478, 5
        %v2529 = vrot.slane %v2528, 4
        %v2530 = vrot.slane %v2100, 5
        %v2531 = vsel %vm824, %v2529, %v2530
        %v2532 = vrot.slane %v2530, 4
        %v2533 = vrot.slane %v2101, 5
        %v2534 = vsel %vm824, %v2532, %v2533
        %v2535 = vrot.slane %v2479, 5
        %v2536 = vrot.slane %v2535, 4
        %v2537 = vrot.slane %v2103, 5
        %v2538 = vsel %vm824, %v2536, %v2537
        %v2539 = vrot.slane %v2537, 4
        %v2540 = vrot.slane %v2104, 5
        %v2541 = vsel %vm824, %v2539, %v2540
        %v2542 = vrot.slane %v2480, 5
        %v2543 = vrot.slane %v2542, 4
        %v2544 = vrot.slane %v2106, 5
        %v2545 = vsel %vm824, %v2543, %v2544
        %v2546 = vrot.slane %v2544, 4
        %v2547 = vrot.slane %v2107, 5
        %v2548 = vsel %vm824, %v2546, %v2547
        %v2549 = vrot.slane %v2481, 5
        %v2550 = vrot.slane %v2549, 4
        %v2551 = vrot.slane %v2109, 5
        %v2552 = vsel %vm824, %v2550, %v2551
        %v2553 = vrot.slane %v2551, 4
        %v2554 = vrot.slane %v2110, 5
        %v2555 = vsel %vm824, %v2553, %v2554
        %v2556 = vrot.slane %v2482, 5
        %v2557 = vrot.slane %v2556, 4
        %v2558 = vrot.slane %v2112, 5
        %v2559 = vsel %vm824, %v2557, %v2558
        %v2560 = vrot.slane %v2558, 4
        %v2561 = vrot.slane %v2113, 5
        %v2562 = vsel %vm824, %v2560, %v2561
        %v2563 = vld [vmem:[#allocation5 + $0x10] sm:$0x3]
        %v2564 = vunpack.c.l.b16 %v2510
        %v2565 = vunpack.c.l.b16 %v2513
        %v2566 = vunpack.c.l.b16 %v2517
        %v2567 = vunpack.c.l.b16 %v2520
        %v2568 = vunpack.c.l.b16 %v2524
        %v2569 = vunpack.c.l.b16 %v2527
        %v2570 = vunpack.c.l.b16 %v2531
        %v2571 = vunpack.c.l.b16 %v2534
        %v2572 = vunpack.c.l.b16 %v2538
        %v2573 = vunpack.c.l.b16 %v2541
        %v2574 = vunpack.c.l.b16 %v2545
        %v2575 = vunpack.c.l.b16 %v2548
        %v2576 = vunpack.c.l.b16 %v2552
        %v2577 = vunpack.c.l.b16 %v2555
        %v2578 = vunpack.c.l.b16 %v2559
        %v2579 = vunpack.c.l.b16 %v2562
        %v2580 = vpack.c.b16 %v2565, %v2564
        %v2581 = vpack.c.b16 %v2567, %v2566
        %v2582 = vpack.c.b16 %v2569, %v2568
        %v2583 = vpack.c.b16 %v2571, %v2570
        %v2584 = vpack.c.b16 %v2573, %v2572
        %v2585 = vpack.c.b16 %v2575, %v2574
        %v2586 = vpack.c.b16 %v2577, %v2576
        %v2587 = vpack.c.b16 %v2579, %v2578
        %v2589 = vsel %vm508, %v2580, 0
        %v2592 = vsel %vm508, %v2581, 0
        %v2595 = vsel %vm508, %v2582, 0
        %v2598 = vsel %vm508, %v2583, 0
        %v2601 = vsel %vm508, %v2584, 0
        %v2604 = vsel %vm508, %v2585, 0
        %v2607 = vsel %vm508, %v2586, 0
        %v2610 = vsel %vm508, %v2587, 0
        %v2613 = vsel %vm533, %v2563, 0
        %2615 = vmatprep.subr.bf16.mxu0 0
        %2616 = vmatpush1.bf16.msra.mxu0 %v2613
        %2617 = vmatprep.subr.bf16.mxu0 0
        %2618 = vmatpush1.bf16.msra.mxu0 0
        %2619 = vmatprep.subr.bf16.mxu0 0
        %2620 = vmatpush1.bf16.msra.mxu0 0
        %2621 = vmatprep.subr.bf16.mxu0 0
        %2622 = vmatpush1.bf16.msra.mxu0 0
        %2623 = vmatprep.subr.bf16.mxu0 0
        %2624 = vmatpush1.bf16.msra.mxu0 0
        %2625 = vmatprep.subr.bf16.mxu0 0
        %2626 = vmatpush1.bf16.msra.mxu0 0
        %2627 = vmatprep.subr.bf16.mxu0 0
        %2628 = vmatpush1.bf16.msra.mxu0 0
        %2629 = vmatprep.subr.bf16.mxu0 0
        %2630 = vmatpush1.bf16.msra.mxu0 0
        %2631 = vmatprep.subr.bf16.mxu0 0
        %2632 = vmatpush1.bf16.msra.mxu0 0
        %2633 = vmatprep.subr.bf16.mxu0 0
        %2634 = vmatpush1.bf16.msra.mxu0 0
        %2635 = vmatprep.subr.bf16.mxu0 0
        %2636 = vmatpush1.bf16.msra.mxu0 0
        %2637 = vmatprep.subr.bf16.mxu0 0
        %2638 = vmatpush1.bf16.msra.mxu0 0
        %2639 = vmatprep.subr.bf16.mxu0 0
        %2640 = vmatpush1.bf16.msra.mxu0 0
        %2641 = vmatprep.subr.bf16.mxu0 0
        %2642 = vmatpush1.bf16.msra.mxu0 0
        %2643 = vmatprep.subr.bf16.mxu0 0
        %2644 = vmatpush1.bf16.msra.mxu0 0
        %2645 = vmatprep.subr.bf16.mxu0 0
        %2646 = vmatpush1.bf16.msra.mxu0 0
        %2647 = vmatprep.mubr.bf16.mxu0 0
        %2648 = vmatmul.mubr.bf16.gmra.mrb[0].mxu0 %v2589
        %v2649 = vpop.f32.mrb[0].mxu0
        %v2650 = vadd.f32 0.0, %v2649
        %v2651 = vpop.f32.mrb[0].mxu0
        %v2652 = vpop.f32.mrb[0].mxu0
        %v2653 = vadd.f32 0.0, %v2652
        %v2654 = vpop.f32.mrb[0].mxu0
        %2655 = vmatprep.mubr.bf16.mxu0 0
        %2656 = vmatmul.mubr.bf16.gmra.mrb[0].mxu0 %v2592
        %v2657 = vpop.f32.mrb[0].mxu0
        %v2658 = vadd.f32 0.0, %v2657
        %v2659 = vpop.f32.mrb[0].mxu0
        %v2660 = vpop.f32.mrb[0].mxu0
        %v2661 = vadd.f32 0.0, %v2660
        %v2662 = vpop.f32.mrb[0].mxu0
        %2663 = vmatprep.mubr.bf16.mxu0 0
        %2664 = vmatmul.mubr.bf16.gmra.mrb[0].mxu0 %v2595
        %v2665 = vpop.f32.mrb[0].mxu0
        %v2666 = vadd.f32 0.0, %v2665
        %v2667 = vpop.f32.mrb[0].mxu0
        %v2668 = vpop.f32.mrb[0].mxu0
        %v2669 = vadd.f32 0.0, %v2668
        %v2670 = vpop.f32.mrb[0].mxu0
        %2671 = vmatprep.mubr.bf16.mxu0 0
        %2672 = vmatmul.mubr.bf16.gmra.mrb[0].mxu0 %v2598
        %v2673 = vpop.f32.mrb[0].mxu0
        %v2674 = vadd.f32 0.0, %v2673
        %v2675 = vpop.f32.mrb[0].mxu0
        %v2676 = vpop.f32.mrb[0].mxu0
        %v2677 = vadd.f32 0.0, %v2676
        %v2678 = vpop.f32.mrb[0].mxu0
        %2679 = vmatprep.mubr.bf16.mxu0 0
        %2680 = vmatmul.mubr.bf16.gmra.mrb[0].mxu0 %v2601
        %v2681 = vpop.f32.mrb[0].mxu0
        %v2682 = vadd.f32 0.0, %v2681
        %v2683 = vpop.f32.mrb[0].mxu0
        %v2684 = vpop.f32.mrb[0].mxu0
        %v2685 = vadd.f32 0.0, %v2684
        %v2686 = vpop.f32.mrb[0].mxu0
        %2687 = vmatprep.mubr.bf16.mxu0 0
        %2688 = vmatmul.mubr.bf16.gmra.mrb[0].mxu0 %v2604
        %v2689 = vpop.f32.mrb[0].mxu0
        %v2690 = vadd.f32 0.0, %v2689
        %v2691 = vpop.f32.mrb[0].mxu0
        %v2692 = vpop.f32.mrb[0].mxu0
        %v2693 = vadd.f32 0.0, %v2692
        %v2694 = vpop.f32.mrb[0].mxu0
        %2695 = vmatprep.mubr.bf16.mxu0 0
        %2696 = vmatmul.mubr.bf16.gmra.mrb[0].mxu0 %v2607
        %v2697 = vpop.f32.mrb[0].mxu0
        %v2698 = vadd.f32 0.0, %v2697
        %v2699 = vpop.f32.mrb[0].mxu0
        %v2700 = vpop.f32.mrb[0].mxu0
        %v2701 = vadd.f32 0.0, %v2700
        %v2702 = vpop.f32.mrb[0].mxu0
        %2703 = vmatprep.mubr.bf16.mxu0 0
        %2704 = vmatmul.mubr.bf16.gmra.mrb[0].mxu0 %v2610
        %v2705 = vpop.f32.mrb[0].mxu0
        %v2706 = vadd.f32 0.0, %v2705
        %v2707 = vpop.f32.mrb[0].mxu0
        %v2708 = vpop.f32.mrb[0].mxu0
        %v2709 = vadd.f32 0.0, %v2708
        %v2710 = vpop.f32.mrb[0].mxu0
        %2711 = vdwg.mxu0
        %v2712 = vadd.f32 %v2459, %v2650
        %v2713 = vadd.f32 %v2460, %v2653
        %v2714 = vadd.f32 %v2461, %v2658
        %v2715 = vadd.f32 %v2462, %v2661
        %v2716 = vadd.f32 %v2463, %v2666
        %v2717 = vadd.f32 %v2464, %v2669
        %v2718 = vadd.f32 %v2465, %v2674
        %v2719 = vadd.f32 %v2466, %v2677
        %v2720 = vadd.f32 %v2467, %v2682
        %v2721 = vadd.f32 %v2468, %v2685
        %v2722 = vadd.f32 %v2469, %v2690
        %v2723 = vadd.f32 %v2470, %v2693
        %v2724 = vadd.f32 %v2471, %v2698
        %v2725 = vadd.f32 %v2472, %v2701
        %v2726 = vadd.f32 %v2473, %v2706
        %v2727 = vadd.f32 %v2474, %v2709
        %v2728 = vld [vmem:[#allocation7] sm:$0x1]
        %v2730 = vlaneseq
        %v2731 = vshrl.u32 %v2730, 7
        %v2732 = vsub.s32 0, %v2731
        %v2733 = vrot.slane %v2728, %v2732
        %v2735 = vadd.f32 %v2712, %v2733
        %v2736 = vadd.f32 %v2713, %v2733
        %v2737 = vadd.f32 %v2714, %v2733
        %v2738 = vadd.f32 %v2715, %v2733
        %v2739 = vadd.f32 %v2716, %v2733
        %v2740 = vadd.f32 %v2717, %v2733
        %v2741 = vadd.f32 %v2718, %v2733
        %v2742 = vadd.f32 %v2719, %v2733
        %v2743 = vadd.f32 %v2720, %v2733
        %v2744 = vadd.f32 %v2721, %v2733
        %v2745 = vadd.f32 %v2722, %v2733
        %v2746 = vadd.f32 %v2723, %v2733
        %v2747 = vadd.f32 %v2724, %v2733
        %v2748 = vadd.f32 %v2725, %v2733
        %v2749 = vadd.f32 %v2726, %v2733
        %v2750 = vadd.f32 %v2727, %v2733
        %v2751 = vmax.f32 %v2735, 0.0
        %v2752 = vmax.f32 %v2736, 0.0
        %v2753 = vmax.f32 %v2737, 0.0
        %v2754 = vmax.f32 %v2738, 0.0
        %v2755 = vmax.f32 %v2739, 0.0
        %v2756 = vmax.f32 %v2740, 0.0
        %v2757 = vmax.f32 %v2741, 0.0
        %v2758 = vmax.f32 %v2742, 0.0
        %v2759 = vmax.f32 %v2743, 0.0
        %v2760 = vmax.f32 %v2744, 0.0
        %v2761 = vmax.f32 %v2745, 0.0
        %v2762 = vmax.f32 %v2746, 0.0
        %v2763 = vmax.f32 %v2747, 0.0
        %v2764 = vmax.f32 %v2748, 0.0
        %v2765 = vmax.f32 %v2749, 0.0
        %v2766 = vmax.f32 %v2750, 0.0
        %2767 = vst [vmem:[%s252] sm:$0xff] %v2751
        %2768 = vst [vmem:[%s252 + $0x8] sm:$0xff] %v2752
        %2769 = vst [vmem:[%s252 + $0x10] sm:$0xff] %v2753
        %2770 = vst [vmem:[%s252 + $0x18] sm:$0xff] %v2754
        %2771 = vst [vmem:[%s252 + $0x20] sm:$0xff] %v2755
        %2772 = vst [vmem:[%s252 + $0x28] sm:$0xff] %v2756
        %2773 = vst [vmem:[%s252 + $0x30] sm:$0xff] %v2757
        %2774 = vst [vmem:[%s252 + $0x38] sm:$0xff] %v2758
        %2775 = vst [vmem:[%s252 + $0x40] sm:$0xff] %v2759
        %2776 = vst [vmem:[%s252 + $0x48] sm:$0xff] %v2760
        %2777 = vst [vmem:[%s252 + $0x50] sm:$0xff] %v2761
        %2778 = vst [vmem:[%s252 + $0x58] sm:$0xff] %v2762
        %2779 = vst [vmem:[%s252 + $0x60] sm:$0xff] %v2763
        %2780 = vst [vmem:[%s252 + $0x68] sm:$0xff] %v2764
        %2781 = vst [vmem:[%s252 + $0x70] sm:$0xff] %v2765
        %2782 = vst [vmem:[%s252 + $0x78] sm:$0xff] %v2766
        %s2783 = sand.u32 %s130, 1
        %s2784 = scalar_lea.sflag [#allocation4], %s2783
        %s2785 = sand.u32 %s130, 1
        %s2786 = smul.addr %s2785, 128
        %s2787 = scalar_lea.vmem [#allocation8], %s2786
        // Predicated region
        $region45: #{conv_bn_act.1} parent=31 // pred_check
          %p2788 = pneg %p140
        $region46: #{conv_bn_act.1} parent=31 // pred_check_branch
          %2790 = sbr.rel (%p2788) target = $region48
        $region47: #{conv_bn_act.1} parent=31 // pred_region
          %s2791 = smul.u32 8, %s28
          %s2793 = ssub.s32 2048, 2048
          %2794 = vsyncadd %s2784, %s2793
          %s2795 = smul.addr %s2791, 2
          %s2796 = sadd.s32 %s27, %s2795
          %s2797 = smul.addr %s26, 32
          %s2798 = sadd.s32 %s2796, %s2797
          %s2799 = smul.addr %s2798, 128
          %s2800 = scalar_lea.hbm %s3, %s2799
          %s2801 = sshll.u32 %s2787, 4
          %s2802 = int_to_ptr.vmem [resolvable:$true] %s2801
          %2807 = dma.vmem_to_hbm [thread:$0]  %s2802, 2048, %s2800, %s2784, 128, 128, 8
        $region48: #{conv_bn_act.1} parent=31 // pred_fallthru
          _
      $region32: #{conv_bn_act.1} parent=5 // pred_fallthru
        _
      %p2808 = scmp.le.s32.totalorder 2, %s16
      // Predicated region
      $region49: #{conv_bn_act.1} parent=5 // pred_check
        %p2809 = pneg %p2808
      $region50: #{conv_bn_act.1} parent=5 // pred_check_branch
        %2811 = sbr.rel (%p2809) target = $region52
      $region51: #{conv_bn_act.1} parent=5 // pred_region
        %s2812 = ssub.s32 %s16, 2
        // Predicated region
        $region53: #{conv_bn_act.1} parent=51 // pred_check
          %p2813 = pneg %p146
        $region54: #{conv_bn_act.1} parent=51 // pred_check_branch
          %2815 = sbr.rel (%p2813) target = $region56
        $region55: #{conv_bn_act.1} parent=51 // pred_region
          %s2816 = sand.u32 %s131, 1
          %s2817 = scalar_lea.sflag [#allocation4], %s2816
          %s2818 = sand.u32 %s131, 1
          %s2819 = smul.addr %s2818, 128
          %s2820 = scalar_lea.vmem [#allocation8], %s2819
          %2821 = dma.done %s2817, 2048
        $region56: #{conv_bn_act.1} parent=51 // pred_fallthru
          _
      $region52: #{conv_bn_act.1} parent=5 // pred_fallthru
        _
    $region6: #{conv_bn_act.1} parent=1 // loop_footer
      %s20 = sadd.s32 1, %s16
    $region7: #{conv_bn_act.1} parent=1 // loop_footer_branch
      %15 = sbr.rel target = $region3
    $region8: #{conv_bn_act.1} parent=1 // loop_exit
      _
    %2822 = vsyncpa [#allocation3], 1
    %s2823 = scalar_lea.sflag [#allocation3], 1
    %2824 = vsyncpa %s2823, 1
    %2825 = vsyncpa [#allocation6], 1
    %2826 = vsyncpa [#allocation4], 1
    %s2827 = scalar_lea.sflag [#allocation4], 1
    %2828 = vsyncpa %s2827, 1

</llo_original>
